<compile_context>
chip_gen: v7x
topology: tpu7x:2x2x1
jax: 0.10.0
libtpu: 0.0.40
codegen_flags: <defaults>
</compile_context>

<pallas_src>
import functools

import jax
import jax.numpy as jnp
from jax.experimental import pallas as pl
from jax.experimental.pallas import tpu as pltpu


def _fold_weights(weight):
    """weight [Cout, Cin, 3, 3] -> folded per-phase 2x2-tap weights [4, 4, Cin, Cout].

    Axis 0: output phase p = 2*py + px of the 2x-upsampled grid.
    Axis 1: tap t = 2*ry + rx into the zero-padded original-resolution input,
            i.e. padded pixel (i + py + ry, j + px + rx) for output (2i+py, 2j+px).
    """
    cout, cin, _, _ = weight.shape
    w_t = jnp.transpose(weight, (2, 3, 1, 0))            # [3, 3, Cin, Cout]

    def tap_of(phase, d):                                 # which of the 2 rows/cols tap d hits
        return (phase + d - 1) // 2 + 1 - phase           # in {0, 1}

    wfold = jnp.zeros((2, 2, 2, 2, cin, cout), weight.dtype)
    for py in range(2):
        for px in range(2):
            for dy in range(3):
                for dx in range(3):
                    wfold = wfold.at[py, px, tap_of(py, dy), tap_of(px, dx)].add(w_t[dy, dx])
    return wfold.reshape(4, 4, cin, cout)


def _pick_row_tile(H, W, target_m=1024):
    """Largest divisor of H with TH*W <= target_m (keeps per-phase GEMM M modest)."""
    th = 1
    for cand in range(1, H + 1):
        if H % cand == 0 and cand * W <= target_m:
            th = cand
    return th


def upsample_forward(x, weight, bias, *, row_tile=None, compute_dtype=jnp.bfloat16):
    """x: [B, C, H, W] (NCHW), weight: [C, C, 3, 3], bias: [C].
    Returns [B, C, 2H, 2W], matching Conv2d(C,C,3,pad=1)(Upsample(2,'nearest')(x))."""
    B, C, H, W = x.shape
    Cin = Cout = C

    TH = _pick_row_tile(H, W) if row_tile is None else int(row_tile)
    assert H % TH == 0, (H, TH)
    NT = H // TH

    # Fold the 4 taps into the contraction dim only when the lane concat is 128-aligned.
    fold_k = (Cin % 128 == 0)

    # --- glue at ORIGINAL resolution only: NCHW->NHWC + bf16 cast + 1px zero pad ---
    x_nhwc = jnp.transpose(x, (0, 2, 3, 1)).astype(compute_dtype)   # [B, H, W, C]
    xp = jnp.pad(x_nhwc, ((0, 0), (1, 1), (1, 1), (0, 0)))          # [B, H+2, W+2, C]
    wfold = _fold_weights(weight)                                   # [4, 4, Cin, Cout]
    if fold_k:
        wfold = wfold.reshape(4, 4 * Cin, Cout)                     # K index = tap*Cin + c
    wfold = wfold.astype(compute_dtype)
    b2d = bias.reshape(1, Cout).astype(jnp.float32)
    out_dtype = x.dtype

    def kernel(xp_ref, w_ref, b_ref, out_ref):
        # xp_ref: (H+2, W+2, Cin)  resident per batch (constant block idx along rows)
        # w_ref:  folded weights, resident (constant block idx over the whole grid)
        # b_ref:  (1, Cout) f32     out_ref: (4, TH, W, Cout) rows [t*TH, (t+1)*TH)
        h0 = pl.multiple_of(pl.program_id(1) * TH, TH)
        # Three W-shifted slabs (the sublane relayouts), built once per grid step.
        slabs = [xp_ref[pl.ds(h0, TH + 2), pl.ds(dx, W), :] for dx in range(3)]
        bias_v = b_ref[...]                                          # (1, Cout) f32

        for py in range(2):                                          # static unroll: 4 phases
            for px in range(2):
                p = 2 * py + px
                # taps in order t = 2*ry + rx, each (TH*W, Cin); cheap row sub-slices.
                taps = [slabs[px + rx][py + ry:py + ry + TH].reshape(TH * W, Cin)
                        for ry in (0, 1) for rx in (0, 1)]
                if fold_k:
                    lhs = jnp.concatenate(taps, axis=-1)             # (TH*W, 4*Cin)
                    acc = jnp.dot(lhs, w_ref[p], preferred_element_type=jnp.float32)
                else:
                    acc = jnp.dot(taps[0], w_ref[p, 0], preferred_element_type=jnp.float32)
                    for t in range(1, 4):
                        acc = acc + jnp.dot(taps[t], w_ref[p, t],
                                            preferred_element_type=jnp.float32)
                out_ref[p] = (acc + bias_v).reshape(TH, W, Cout).astype(out_ref.dtype)

    flops = 2 * B * (4 * H * W) * (4 * Cin) * Cout                   # 4 phases x 4 taps
    bytes_accessed = int(xp.size * xp.dtype.itemsize                 # input read once/batch
                         + wfold.size * wfold.dtype.itemsize         # weights read once
                         + b2d.size * 4
                         + B * 4 * H * W * Cout * jnp.dtype(out_dtype).itemsize)

    out = pl.pallas_call(
        kernel,
        out_shape=jax.ShapeDtypeStruct((B, 4, H, W, Cout), out_dtype),
        grid_spec=pltpu.PrefetchScalarGridSpec(
            num_scalar_prefetch=0,
            grid=(B, NT),                                            # (batch, row tile)
            in_specs=[
                pl.BlockSpec((None, H + 2, W + 2, Cin), lambda b, t: (b, 0, 0, 0)),
                pl.BlockSpec(wfold.shape, lambda b, t: (0,) * wfold.ndim),
                pl.BlockSpec((1, Cout), lambda b, t: (0, 0)),
            ],
            out_specs=pl.BlockSpec((None, 4, TH, W, Cout), lambda b, t: (b, 0, t, 0, 0)),
        ),
        compiler_params=pltpu.CompilerParams(
            dimension_semantics=("parallel", "parallel"),
            vmem_limit_bytes=64 * 1024 * 1024,
        ),
        cost_estimate=pl.CostEstimate(flops=flops, transcendentals=0,
                                      bytes_accessed=bytes_accessed),
    )(xp, wfold, b2d)

    # out[b, 2*py+px, i, j, c] == y[b, c, 2i+py, 2j+px]  ->  NCHW (single transpose pass)
    out = out.reshape(B, 2, 2, H, W, Cout)
    out = jnp.transpose(out, (0, 5, 3, 1, 4, 2))                     # [B, C, H, 2, W, 2]
    return out.reshape(B, Cout, 2 * H, 2 * W)


if __name__ == "__main__":
    key = jax.random.PRNGKey(0)
    kx, kw, kb = jax.random.split(key, 3)

    B, C, H, W = 2, 4, 16, 16
    x = jax.random.normal(kx, (B, C, H, W), dtype=jnp.float32)

    # Deterministic parameter init (mimics PyTorch Conv2d default uniform bound).
    bound = 1.0 / (C * 9) ** 0.5
    weight = jax.random.uniform(kw, (C, C, 3, 3), minval=-bound, maxval=bound,
                                dtype=jnp.float32)
    bias = jax.random.uniform(kb, (C,), minval=-bound, maxval=bound,
                              dtype=jnp.float32)

    # Two configurations: multi-row-tile grid (exercises the halo/row indexing) and
    # whole-image-per-batch blocks.
    fwd_tiled = jax.jit(functools.partial(upsample_forward, row_tile=4))
    fwd_whole = jax.jit(functools.partial(upsample_forward, row_tile=H))
    out_tiled = jax.block_until_ready(fwd_tiled(x, weight, bias))
    out_whole = jax.block_until_ready(fwd_whole(x, weight, bias))

    # Reference: nearest 2x upsample + 3x3 same conv, quantization-matched to the
    # kernel's bf16 activations (weights stay f32 in the reference; remaining error
    # is only the bf16 rounding of the folded weights -> loose tolerance).
    xq = x.astype(jnp.bfloat16).astype(jnp.float32)
    xu_ref = jnp.repeat(jnp.repeat(xq, 2, axis=2), 2, axis=3)
    ref = jax.lax.conv_general_dilated(
        xu_ref, weight, window_strides=(1, 1), padding=((1, 1), (1, 1)),
        dimension_numbers=("NCHW", "OIHW", "NCHW"),
        precision=jax.lax.Precision.HIGHEST) + bias[None, :, None, None]

    for out in (out_tiled, out_whole):
        assert out.shape == (B, C, 2 * H, 2 * W), out.shape
        err = float(jnp.max(jnp.abs(out - ref)))
        assert jnp.allclose(out, ref, atol=2e-2, rtol=2e-2), err
    print("KERNEL_OK")
</pallas_src>

<mosaic_0001>
module attributes {stable_mosaic.version = 11 : i64} {
  func.func @kernel(%arg0: i32, %arg1: i32, %arg2: memref<1x18x18x4xbf16, #tpu.memory_space<vmem>>, %arg3: memref<4x4x4x4xbf16, #tpu.memory_space<vmem>>, %arg4: memref<1x4xf32, #tpu.memory_space<vmem>>, %arg5: memref<1x4x4x16x4xf32, #tpu.memory_space<vmem>>) attributes {dimension_semantics = [#tpu.dimension_semantics<parallel>, #tpu.dimension_semantics<parallel>], iteration_bounds = array<i64: 2, 4>, scalar_prefetch = 0 : i64, scratch_operands = 0 : i64, tpu.core_type = #tpu.core_type<tc>, window_params = [{transform_indices = @transform_0, window_bounds = array<i64: 1, 18, 18, 4>}, {pipeline_mode = #tpu.pipeline_mode<synchronous>, transform_indices = @transform_1, window_bounds = array<i64: 4, 4, 4, 4>}, {pipeline_mode = #tpu.pipeline_mode<synchronous>, transform_indices = @transform_2, window_bounds = array<i64: 1, 4>}, {transform_indices = @transform_3, window_bounds = array<i64: 1, 4, 4, 16, 4>}]} {
    %c4_i32 = arith.constant 4 : i32
    %0 = arith.muli %arg1, %c4_i32 : i32
    %1 = tpu.assume_multiple %0, 4 : i32
    %c0 = arith.constant 0 : index
    %2 = arith.index_cast %1 : i32 to index
    %c0_0 = arith.constant 0 : index
    %c0_1 = arith.constant 0 : index
    %3 = vector.load %arg2[%c0, %2, %c0_0, %c0_1] : memref<1x18x18x4xbf16, #tpu.memory_space<vmem>>, vector<1x6x16x4xbf16>
    %4 = vector.shape_cast %3 : vector<1x6x16x4xbf16> to vector<6x16x4xbf16>
    %c0_2 = arith.constant 0 : index
    %5 = arith.index_cast %1 : i32 to index
    %c1 = arith.constant 1 : index
    %c0_3 = arith.constant 0 : index
    %6 = vector.load %arg2[%c0_2, %5, %c1, %c0_3] : memref<1x18x18x4xbf16, #tpu.memory_space<vmem>>, vector<1x6x16x4xbf16>
    %7 = vector.shape_cast %6 : vector<1x6x16x4xbf16> to vector<6x16x4xbf16>
    %c0_4 = arith.constant 0 : index
    %8 = arith.index_cast %1 : i32 to index
    %c2 = arith.constant 2 : index
    %c0_5 = arith.constant 0 : index
    %9 = vector.load %arg2[%c0_4, %8, %c2, %c0_5] : memref<1x18x18x4xbf16, #tpu.memory_space<vmem>>, vector<1x6x16x4xbf16>
    %10 = vector.shape_cast %9 : vector<1x6x16x4xbf16> to vector<6x16x4xbf16>
    %c0_6 = arith.constant 0 : index
    %c0_7 = arith.constant 0 : index
    %11 = vector.load %arg4[%c0_6, %c0_7] : memref<1x4xf32, #tpu.memory_space<vmem>>, vector<1x4xf32>
    %12 = vector.extract_strided_slice %4 {offsets = [0, 0, 0], sizes = [4, 16, 4], strides = [1, 1, 1]} : vector<6x16x4xbf16> to vector<4x16x4xbf16>
    %13 = vector.shape_cast %12 : vector<4x16x4xbf16> to vector<64x4xbf16>
    %14 = vector.extract_strided_slice %7 {offsets = [0, 0, 0], sizes = [4, 16, 4], strides = [1, 1, 1]} : vector<6x16x4xbf16> to vector<4x16x4xbf16>
    %15 = vector.shape_cast %14 : vector<4x16x4xbf16> to vector<64x4xbf16>
    %16 = vector.extract_strided_slice %4 {offsets = [1, 0, 0], sizes = [4, 16, 4], strides = [1, 1, 1]} : vector<6x16x4xbf16> to vector<4x16x4xbf16>
    %17 = vector.shape_cast %16 : vector<4x16x4xbf16> to vector<64x4xbf16>
    %18 = vector.extract_strided_slice %7 {offsets = [1, 0, 0], sizes = [4, 16, 4], strides = [1, 1, 1]} : vector<6x16x4xbf16> to vector<4x16x4xbf16>
    %19 = vector.shape_cast %18 : vector<4x16x4xbf16> to vector<64x4xbf16>
    %c0_8 = arith.constant 0 : index
    %c0_9 = arith.constant 0 : index
    %c0_10 = arith.constant 0 : index
    %c0_11 = arith.constant 0 : index
    %20 = vector.load %arg3[%c0_8, %c0_9, %c0_10, %c0_11] : memref<4x4x4x4xbf16, #tpu.memory_space<vmem>>, vector<1x1x4x4xbf16>
    %21 = vector.shape_cast %20 : vector<1x1x4x4xbf16> to vector<4x4xbf16>
    %cst = arith.constant dense<0.000000e+00> : vector<64x4xf32>
    %22 = tpu.matmul %13, %21, %cst {dimension_numbers = #tpu.dot_dimension_numbers<[1], [0], [0], [1], [0, 0, 1, 1], [], []>} : vector<64x4xbf16>, vector<4x4xbf16>, vector<64x4xf32> -> vector<64x4xf32>
    %c0_12 = arith.constant 0 : index
    %c1_13 = arith.constant 1 : index
    %c0_14 = arith.constant 0 : index
    %c0_15 = arith.constant 0 : index
    %23 = vector.load %arg3[%c0_12, %c1_13, %c0_14, %c0_15] : memref<4x4x4x4xbf16, #tpu.memory_space<vmem>>, vector<1x1x4x4xbf16>
    %24 = vector.shape_cast %23 : vector<1x1x4x4xbf16> to vector<4x4xbf16>
    %cst_16 = arith.constant dense<0.000000e+00> : vector<64x4xf32>
    %25 = tpu.matmul %15, %24, %cst_16 {dimension_numbers = #tpu.dot_dimension_numbers<[1], [0], [0], [1], [0, 0, 1, 1], [], []>} : vector<64x4xbf16>, vector<4x4xbf16>, vector<64x4xf32> -> vector<64x4xf32>
    %26 = arith.addf %22, %25 : vector<64x4xf32>
    %c0_17 = arith.constant 0 : index
    %c2_18 = arith.constant 2 : index
    %c0_19 = arith.constant 0 : index
    %c0_20 = arith.constant 0 : index
    %27 = vector.load %arg3[%c0_17, %c2_18, %c0_19, %c0_20] : memref<4x4x4x4xbf16, #tpu.memory_space<vmem>>, vector<1x1x4x4xbf16>
    %28 = vector.shape_cast %27 : vector<1x1x4x4xbf16> to vector<4x4xbf16>
    %cst_21 = arith.constant dense<0.000000e+00> : vector<64x4xf32>
    %29 = tpu.matmul %17, %28, %cst_21 {dimension_numbers = #tpu.dot_dimension_numbers<[1], [0], [0], [1], [0, 0, 1, 1], [], []>} : vector<64x4xbf16>, vector<4x4xbf16>, vector<64x4xf32> -> vector<64x4xf32>
    %30 = arith.addf %26, %29 : vector<64x4xf32>
    %c0_22 = arith.constant 0 : index
    %c3 = arith.constant 3 : index
    %c0_23 = arith.constant 0 : index
    %c0_24 = arith.constant 0 : index
    %31 = vector.load %arg3[%c0_22, %c3, %c0_23, %c0_24] : memref<4x4x4x4xbf16, #tpu.memory_space<vmem>>, vector<1x1x4x4xbf16>
    %32 = vector.shape_cast %31 : vector<1x1x4x4xbf16> to vector<4x4xbf16>
    %cst_25 = arith.constant dense<0.000000e+00> : vector<64x4xf32>
    %33 = tpu.matmul %19, %32, %cst_25 {dimension_numbers = #tpu.dot_dimension_numbers<[1], [0], [0], [1], [0, 0, 1, 1], [], []>} : vector<64x4xbf16>, vector<4x4xbf16>, vector<64x4xf32> -> vector<64x4xf32>
    %34 = arith.addf %30, %33 : vector<64x4xf32>
    %35 = vector.broadcast %11 : vector<1x4xf32> to vector<64x4xf32>
    %36 = arith.addf %34, %35 : vector<64x4xf32>
    %37 = vector.shape_cast %36 : vector<64x4xf32> to vector<4x16x4xf32>
    %c0_26 = arith.constant 0 : index
    %c0_27 = arith.constant 0 : index
    %c0_28 = arith.constant 0 : index
    %c0_29 = arith.constant 0 : index
    %c0_30 = arith.constant 0 : index
    %38 = vector.load %arg5[%c0_26, %c0_27, %c0_28, %c0_29, %c0_30] : memref<1x4x4x16x4xf32, #tpu.memory_space<vmem>>, vector<1x1x4x16x4xf32>
    %39 = vector.shape_cast %38 : vector<1x1x4x16x4xf32> to vector<4x16x4xf32>
    %40 = vector.shape_cast %37 : vector<4x16x4xf32> to vector<1x1x4x16x4xf32>
    tpu.vector_store %arg5[%c0_26, %c0_27, %c0_28, %c0_29, %c0_30], %40 {strides = array<i32>} : memref<1x4x4x16x4xf32, #tpu.memory_space<vmem>>, vector<1x1x4x16x4xf32>,
    %41 = vector.extract_strided_slice %7 {offsets = [0, 0, 0], sizes = [4, 16, 4], strides = [1, 1, 1]} : vector<6x16x4xbf16> to vector<4x16x4xbf16>
    %42 = vector.shape_cast %41 : vector<4x16x4xbf16> to vector<64x4xbf16>
    %43 = vector.extract_strided_slice %10 {offsets = [0, 0, 0], sizes = [4, 16, 4], strides = [1, 1, 1]} : vector<6x16x4xbf16> to vector<4x16x4xbf16>
    %44 = vector.shape_cast %43 : vector<4x16x4xbf16> to vector<64x4xbf16>
    %45 = vector.extract_strided_slice %7 {offsets = [1, 0, 0], sizes = [4, 16, 4], strides = [1, 1, 1]} : vector<6x16x4xbf16> to vector<4x16x4xbf16>
    %46 = vector.shape_cast %45 : vector<4x16x4xbf16> to vector<64x4xbf16>
    %47 = vector.extract_strided_slice %10 {offsets = [1, 0, 0], sizes = [4, 16, 4], strides = [1, 1, 1]} : vector<6x16x4xbf16> to vector<4x16x4xbf16>
    %48 = vector.shape_cast %47 : vector<4x16x4xbf16> to vector<64x4xbf16>
    %c1_31 = arith.constant 1 : index
    %c0_32 = arith.constant 0 : index
    %c0_33 = arith.constant 0 : index
    %c0_34 = arith.constant 0 : index
    %49 = vector.load %arg3[%c1_31, %c0_32, %c0_33, %c0_34] : memref<4x4x4x4xbf16, #tpu.memory_space<vmem>>, vector<1x1x4x4xbf16>
    %50 = vector.shape_cast %49 : vector<1x1x4x4xbf16> to vector<4x4xbf16>
    %cst_35 = arith.constant dense<0.000000e+00> : vector<64x4xf32>
    %51 = tpu.matmul %42, %50, %cst_35 {dimension_numbers = #tpu.dot_dimension_numbers<[1], [0], [0], [1], [0, 0, 1, 1], [], []>} : vector<64x4xbf16>, vector<4x4xbf16>, vector<64x4xf32> -> vector<64x4xf32>
    %c1_36 = arith.constant 1 : index
    %c1_37 = arith.constant 1 : index
    %c0_38 = arith.constant 0 : index
    %c0_39 = arith.constant 0 : index
    %52 = vector.load %arg3[%c1_36, %c1_37, %c0_38, %c0_39] : memref<4x4x4x4xbf16, #tpu.memory_space<vmem>>, vector<1x1x4x4xbf16>
    %53 = vector.shape_cast %52 : vector<1x1x4x4xbf16> to vector<4x4xbf16>
    %cst_40 = arith.constant dense<0.000000e+00> : vector<64x4xf32>
    %54 = tpu.matmul %44, %53, %cst_40 {dimension_numbers = #tpu.dot_dimension_numbers<[1], [0], [0], [1], [0, 0, 1, 1], [], []>} : vector<64x4xbf16>, vector<4x4xbf16>, vector<64x4xf32> -> vector<64x4xf32>
    %55 = arith.addf %51, %54 : vector<64x4xf32>
    %c1_41 = arith.constant 1 : index
    %c2_42 = arith.constant 2 : index
    %c0_43 = arith.constant 0 : index
    %c0_44 = arith.constant 0 : index
    %56 = vector.load %arg3[%c1_41, %c2_42, %c0_43, %c0_44] : memref<4x4x4x4xbf16, #tpu.memory_space<vmem>>, vector<1x1x4x4xbf16>
    %57 = vector.shape_cast %56 : vector<1x1x4x4xbf16> to vector<4x4xbf16>
    %cst_45 = arith.constant dense<0.000000e+00> : vector<64x4xf32>
    %58 = tpu.matmul %46, %57, %cst_45 {dimension_numbers = #tpu.dot_dimension_numbers<[1], [0], [0], [1], [0, 0, 1, 1], [], []>} : vector<64x4xbf16>, vector<4x4xbf16>, vector<64x4xf32> -> vector<64x4xf32>
    %59 = arith.addf %55, %58 : vector<64x4xf32>
    %c1_46 = arith.constant 1 : index
    %c3_47 = arith.constant 3 : index
    %c0_48 = arith.constant 0 : index
    %c0_49 = arith.constant 0 : index
    %60 = vector.load %arg3[%c1_46, %c3_47, %c0_48, %c0_49] : memref<4x4x4x4xbf16, #tpu.memory_space<vmem>>, vector<1x1x4x4xbf16>
    %61 = vector.shape_cast %60 : vector<1x1x4x4xbf16> to vector<4x4xbf16>
    %cst_50 = arith.constant dense<0.000000e+00> : vector<64x4xf32>
    %62 = tpu.matmul %48, %61, %cst_50 {dimension_numbers = #tpu.dot_dimension_numbers<[1], [0], [0], [1], [0, 0, 1, 1], [], []>} : vector<64x4xbf16>, vector<4x4xbf16>, vector<64x4xf32> -> vector<64x4xf32>
    %63 = arith.addf %59, %62 : vector<64x4xf32>
    %64 = vector.broadcast %11 : vector<1x4xf32> to vector<64x4xf32>
    %65 = arith.addf %63, %64 : vector<64x4xf32>
    %66 = vector.shape_cast %65 : vector<64x4xf32> to vector<4x16x4xf32>
    %c0_51 = arith.constant 0 : index
    %c1_52 = arith.constant 1 : index
    %c0_53 = arith.constant 0 : index
    %c0_54 = arith.constant 0 : index
    %c0_55 = arith.constant 0 : index
    %67 = vector.load %arg5[%c0_51, %c1_52, %c0_53, %c0_54, %c0_55] : memref<1x4x4x16x4xf32, #tpu.memory_space<vmem>>, vector<1x1x4x16x4xf32>
    %68 = vector.shape_cast %67 : vector<1x1x4x16x4xf32> to vector<4x16x4xf32>
    %69 = vector.shape_cast %66 : vector<4x16x4xf32> to vector<1x1x4x16x4xf32>
    tpu.vector_store %arg5[%c0_51, %c1_52, %c0_53, %c0_54, %c0_55], %69 {strides = array<i32>} : memref<1x4x4x16x4xf32, #tpu.memory_space<vmem>>, vector<1x1x4x16x4xf32>,
    %70 = vector.extract_strided_slice %4 {offsets = [1, 0, 0], sizes = [4, 16, 4], strides = [1, 1, 1]} : vector<6x16x4xbf16> to vector<4x16x4xbf16>
    %71 = vector.shape_cast %70 : vector<4x16x4xbf16> to vector<64x4xbf16>
    %72 = vector.extract_strided_slice %7 {offsets = [1, 0, 0], sizes = [4, 16, 4], strides = [1, 1, 1]} : vector<6x16x4xbf16> to vector<4x16x4xbf16>
    %73 = vector.shape_cast %72 : vector<4x16x4xbf16> to vector<64x4xbf16>
    %74 = vector.extract_strided_slice %4 {offsets = [2, 0, 0], sizes = [4, 16, 4], strides = [1, 1, 1]} : vector<6x16x4xbf16> to vector<4x16x4xbf16>
    %75 = vector.shape_cast %74 : vector<4x16x4xbf16> to vector<64x4xbf16>
    %76 = vector.extract_strided_slice %7 {offsets = [2, 0, 0], sizes = [4, 16, 4], strides = [1, 1, 1]} : vector<6x16x4xbf16> to vector<4x16x4xbf16>
    %77 = vector.shape_cast %76 : vector<4x16x4xbf16> to vector<64x4xbf16>
    %c2_56 = arith.constant 2 : index
    %c0_57 = arith.constant 0 : index
    %c0_58 = arith.constant 0 : index
    %c0_59 = arith.constant 0 : index
    %78 = vector.load %arg3[%c2_56, %c0_57, %c0_58, %c0_59] : memref<4x4x4x4xbf16, #tpu.memory_space<vmem>>, vector<1x1x4x4xbf16>
    %79 = vector.shape_cast %78 : vector<1x1x4x4xbf16> to vector<4x4xbf16>
    %cst_60 = arith.constant dense<0.000000e+00> : vector<64x4xf32>
    %80 = tpu.matmul %71, %79, %cst_60 {dimension_numbers = #tpu.dot_dimension_numbers<[1], [0], [0], [1], [0, 0, 1, 1], [], []>} : vector<64x4xbf16>, vector<4x4xbf16>, vector<64x4xf32> -> vector<64x4xf32>
    %c2_61 = arith.constant 2 : index
    %c1_62 = arith.constant 1 : index
    %c0_63 = arith.constant 0 : index
    %c0_64 = arith.constant 0 : index
    %81 = vector.load %arg3[%c2_61, %c1_62, %c0_63, %c0_64] : memref<4x4x4x4xbf16, #tpu.memory_space<vmem>>, vector<1x1x4x4xbf16>
    %82 = vector.shape_cast %81 : vector<1x1x4x4xbf16> to vector<4x4xbf16>
    %cst_65 = arith.constant dense<0.000000e+00> : vector<64x4xf32>
    %83 = tpu.matmul %73, %82, %cst_65 {dimension_numbers = #tpu.dot_dimension_numbers<[1], [0], [0], [1], [0, 0, 1, 1], [], []>} : vector<64x4xbf16>, vector<4x4xbf16>, vector<64x4xf32> -> vector<64x4xf32>
    %84 = arith.addf %80, %83 : vector<64x4xf32>
    %c2_66 = arith.constant 2 : index
    %c2_67 = arith.constant 2 : index
    %c0_68 = arith.constant 0 : index
    %c0_69 = arith.constant 0 : index
    %85 = vector.load %arg3[%c2_66, %c2_67, %c0_68, %c0_69] : memref<4x4x4x4xbf16, #tpu.memory_space<vmem>>, vector<1x1x4x4xbf16>
    %86 = vector.shape_cast %85 : vector<1x1x4x4xbf16> to vector<4x4xbf16>
    %cst_70 = arith.constant dense<0.000000e+00> : vector<64x4xf32>
    %87 = tpu.matmul %75, %86, %cst_70 {dimension_numbers = #tpu.dot_dimension_numbers<[1], [0], [0], [1], [0, 0, 1, 1], [], []>} : vector<64x4xbf16>, vector<4x4xbf16>, vector<64x4xf32> -> vector<64x4xf32>
    %88 = arith.addf %84, %87 : vector<64x4xf32>
    %c2_71 = arith.constant 2 : index
    %c3_72 = arith.constant 3 : index
    %c0_73 = arith.constant 0 : index
    %c0_74 = arith.constant 0 : index
    %89 = vector.load %arg3[%c2_71, %c3_72, %c0_73, %c0_74] : memref<4x4x4x4xbf16, #tpu.memory_space<vmem>>, vector<1x1x4x4xbf16>
    %90 = vector.shape_cast %89 : vector<1x1x4x4xbf16> to vector<4x4xbf16>
    %cst_75 = arith.constant dense<0.000000e+00> : vector<64x4xf32>
    %91 = tpu.matmul %77, %90, %cst_75 {dimension_numbers = #tpu.dot_dimension_numbers<[1], [0], [0], [1], [0, 0, 1, 1], [], []>} : vector<64x4xbf16>, vector<4x4xbf16>, vector<64x4xf32> -> vector<64x4xf32>
    %92 = arith.addf %88, %91 : vector<64x4xf32>
    %93 = vector.broadcast %11 : vector<1x4xf32> to vector<64x4xf32>
    %94 = arith.addf %92, %93 : vector<64x4xf32>
    %95 = vector.shape_cast %94 : vector<64x4xf32> to vector<4x16x4xf32>
    %c0_76 = arith.constant 0 : index
    %c2_77 = arith.constant 2 : index
    %c0_78 = arith.constant 0 : index
    %c0_79 = arith.constant 0 : index
    %c0_80 = arith.constant 0 : index
    %96 = vector.load %arg5[%c0_76, %c2_77, %c0_78, %c0_79, %c0_80] : memref<1x4x4x16x4xf32, #tpu.memory_space<vmem>>, vector<1x1x4x16x4xf32>
    %97 = vector.shape_cast %96 : vector<1x1x4x16x4xf32> to vector<4x16x4xf32>
    %98 = vector.shape_cast %95 : vector<4x16x4xf32> to vector<1x1x4x16x4xf32>
    tpu.vector_store %arg5[%c0_76, %c2_77, %c0_78, %c0_79, %c0_80], %98 {strides = array<i32>} : memref<1x4x4x16x4xf32, #tpu.memory_space<vmem>>, vector<1x1x4x16x4xf32>,
    %99 = vector.extract_strided_slice %7 {offsets = [1, 0, 0], sizes = [4, 16, 4], strides = [1, 1, 1]} : vector<6x16x4xbf16> to vector<4x16x4xbf16>
    %100 = vector.shape_cast %99 : vector<4x16x4xbf16> to vector<64x4xbf16>
    %101 = vector.extract_strided_slice %10 {offsets = [1, 0, 0], sizes = [4, 16, 4], strides = [1, 1, 1]} : vector<6x16x4xbf16> to vector<4x16x4xbf16>
    %102 = vector.shape_cast %101 : vector<4x16x4xbf16> to vector<64x4xbf16>
    %103 = vector.extract_strided_slice %7 {offsets = [2, 0, 0], sizes = [4, 16, 4], strides = [1, 1, 1]} : vector<6x16x4xbf16> to vector<4x16x4xbf16>
    %104 = vector.shape_cast %103 : vector<4x16x4xbf16> to vector<64x4xbf16>
    %105 = vector.extract_strided_slice %10 {offsets = [2, 0, 0], sizes = [4, 16, 4], strides = [1, 1, 1]} : vector<6x16x4xbf16> to vector<4x16x4xbf16>
    %106 = vector.shape_cast %105 : vector<4x16x4xbf16> to vector<64x4xbf16>
    %c3_81 = arith.constant 3 : index
    %c0_82 = arith.constant 0 : index
    %c0_83 = arith.constant 0 : index
    %c0_84 = arith.constant 0 : index
    %107 = vector.load %arg3[%c3_81, %c0_82, %c0_83, %c0_84] : memref<4x4x4x4xbf16, #tpu.memory_space<vmem>>, vector<1x1x4x4xbf16>
    %108 = vector.shape_cast %107 : vector<1x1x4x4xbf16> to vector<4x4xbf16>
    %cst_85 = arith.constant dense<0.000000e+00> : vector<64x4xf32>
    %109 = tpu.matmul %100, %108, %cst_85 {dimension_numbers = #tpu.dot_dimension_numbers<[1], [0], [0], [1], [0, 0, 1, 1], [], []>} : vector<64x4xbf16>, vector<4x4xbf16>, vector<64x4xf32> -> vector<64x4xf32>
    %c3_86 = arith.constant 3 : index
    %c1_87 = arith.constant 1 : index
    %c0_88 = arith.constant 0 : index
    %c0_89 = arith.constant 0 : index
    %110 = vector.load %arg3[%c3_86, %c1_87, %c0_88, %c0_89] : memref<4x4x4x4xbf16, #tpu.memory_space<vmem>>, vector<1x1x4x4xbf16>
    %111 = vector.shape_cast %110 : vector<1x1x4x4xbf16> to vector<4x4xbf16>
    %cst_90 = arith.constant dense<0.000000e+00> : vector<64x4xf32>
    %112 = tpu.matmul %102, %111, %cst_90 {dimension_numbers = #tpu.dot_dimension_numbers<[1], [0], [0], [1], [0, 0, 1, 1], [], []>} : vector<64x4xbf16>, vector<4x4xbf16>, vector<64x4xf32> -> vector<64x4xf32>
    %113 = arith.addf %109, %112 : vector<64x4xf32>
    %c3_91 = arith.constant 3 : index
    %c2_92 = arith.constant 2 : index
    %c0_93 = arith.constant 0 : index
    %c0_94 = arith.constant 0 : index
    %114 = vector.load %arg3[%c3_91, %c2_92, %c0_93, %c0_94] : memref<4x4x4x4xbf16, #tpu.memory_space<vmem>>, vector<1x1x4x4xbf16>
    %115 = vector.shape_cast %114 : vector<1x1x4x4xbf16> to vector<4x4xbf16>
    %cst_95 = arith.constant dense<0.000000e+00> : vector<64x4xf32>
    %116 = tpu.matmul %104, %115, %cst_95 {dimension_numbers = #tpu.dot_dimension_numbers<[1], [0], [0], [1], [0, 0, 1, 1], [], []>} : vector<64x4xbf16>, vector<4x4xbf16>, vector<64x4xf32> -> vector<64x4xf32>
    %117 = arith.addf %113, %116 : vector<64x4xf32>
    %c3_96 = arith.constant 3 : index
    %c3_97 = arith.constant 3 : index
    %c0_98 = arith.constant 0 : index
    %c0_99 = arith.constant 0 : index
    %118 = vector.load %arg3[%c3_96, %c3_97, %c0_98, %c0_99] : memref<4x4x4x4xbf16, #tpu.memory_space<vmem>>, vector<1x1x4x4xbf16>
    %119 = vector.shape_cast %118 : vector<1x1x4x4xbf16> to vector<4x4xbf16>
    %cst_100 = arith.constant dense<0.000000e+00> : vector<64x4xf32>
    %120 = tpu.matmul %106, %119, %cst_100 {dimension_numbers = #tpu.dot_dimension_numbers<[1], [0], [0], [1], [0, 0, 1, 1], [], []>} : vector<64x4xbf16>, vector<4x4xbf16>, vector<64x4xf32> -> vector<64x4xf32>
    %121 = arith.addf %117, %120 : vector<64x4xf32>
    %122 = vector.broadcast %11 : vector<1x4xf32> to vector<64x4xf32>
    %123 = arith.addf %121, %122 : vector<64x4xf32>
    %124 = vector.shape_cast %123 : vector<64x4xf32> to vector<4x16x4xf32>
    %c0_101 = arith.constant 0 : index
    %c3_102 = arith.constant 3 : index
    %c0_103 = arith.constant 0 : index
    %c0_104 = arith.constant 0 : index
    %c0_105 = arith.constant 0 : index
    %125 = vector.load %arg5[%c0_101, %c3_102, %c0_103, %c0_104, %c0_105] : memref<1x4x4x16x4xf32, #tpu.memory_space<vmem>>, vector<1x1x4x16x4xf32>
    %126 = vector.shape_cast %125 : vector<1x1x4x16x4xf32> to vector<4x16x4xf32>
    %127 = vector.shape_cast %124 : vector<4x16x4xf32> to vector<1x1x4x16x4xf32>
    tpu.vector_store %arg5[%c0_101, %c3_102, %c0_103, %c0_104, %c0_105], %127 {strides = array<i32>} : memref<1x4x4x16x4xf32, #tpu.memory_space<vmem>>, vector<1x1x4x16x4xf32>,
    return
  }
  func.func @transform_0(%arg0: i32, %arg1: i32) -> (i32, i32, i32, i32) {
    %c0_i32 = arith.constant 0 : i32
    %c0_i32_0 = arith.constant 0 : i32
    %c0_i32_1 = arith.constant 0 : i32
    %c0_i32_2 = arith.constant 0 : i32
    return %arg0, %c0_i32, %c0_i32_0, %c0_i32_1 : i32, i32, i32, i32
  }
  func.func @transform_1(%arg0: i32, %arg1: i32) -> (i32, i32, i32, i32) {
    %c0_i32 = arith.constant 0 : i32
    %c0_i32_0 = arith.constant 0 : i32
    %c0_i32_1 = arith.constant 0 : i32
    %c0_i32_2 = arith.constant 0 : i32
    %c0_i32_3 = arith.constant 0 : i32
    return %c0_i32, %c0_i32_0, %c0_i32_1, %c0_i32_2 : i32, i32, i32, i32
  }
  func.func @transform_2(%arg0: i32, %arg1: i32) -> (i32, i32) {
    %c0_i32 = arith.constant 0 : i32
    %c0_i32_0 = arith.constant 0 : i32
    %c0_i32_1 = arith.constant 0 : i32
    return %c0_i32, %c0_i32_0 : i32, i32
  }
  func.func @transform_3(%arg0: i32, %arg1: i32) -> (i32, i32, i32, i32, i32) {
    %c0_i32 = arith.constant 0 : i32
    %c0_i32_0 = arith.constant 0 : i32
    %c0_i32_1 = arith.constant 0 : i32
    %c0_i32_2 = arith.constant 0 : i32
    return %arg0, %c0_i32, %arg1, %c0_i32_0, %c0_i32_1 : i32, i32, i32, i32, i32
  }
}

</mosaic_0001>

<llo_original>
// kernel: upsample_forward.1
$region0: #{upsample_forward.1}
  #allocation0 [shape = 'u32[]', space=smem, size = 0x4, offset = 0x4, fixed_abs, tag = 'smem constant byte address 0x4 - core index']
  #allocation1 [shape = 'u32[144,128]{1,0:T(1,128)}', space=vmem, size = 0x12000, scoped, tag = 'internal scratch']
  #allocation9 [shape = 's32[]', space=sflag, size = 0x4, offset = 0, fixed_abs, tag = 'sflag constant byte address 0x0 - dummy sync flag']
  %s0 = inlined_call_operand.hbm [shape: bf16[2,18,18,4], index: 0, kind: input, shape index: {}]
  %s1 = inlined_call_operand.hbm [shape: bf16[4,4,4,4], index: 1, kind: input, shape index: {}]
  %s2 = inlined_call_operand.hbm [shape: f32[1,4], index: 2, kind: input, shape index: {}]
  %s3 = inlined_call_operand.hbm [shape: f32[2,4,16,16,4], index: 3, kind: output, shape index: {}]
  %s4 = sld [smem:[#allocation0]]
  $region57: #{upsample_forward.1} parent=0
    _
  %s6 = ssub.s32 1, %s4
  %s7 = scalar_select 0, %s6, %s4
  $region1: #{upsample_forward.1} parent=0
    #allocation2 [shape = 'u8[221184]{0}', space=vmem, size = 0x36000, scoped, tag = 'input window, operand 0']
    #allocation3 [shape = 's32[2]{0}', space=sflag, size = 0x8, scoped, tag = 'scoped memory for upsample_forward.1']
    #allocation4 [shape = 's32[2]{0}', space=sflag, size = 0x8, scoped, tag = 'scoped memory for upsample_forward.1']
    #allocation5 [shape = 'u8[16384]{0}', space=vmem, size = 0x4000, scoped, tag = 'input window, operand 1, single buffered']
    #allocation6 [shape = 's32[1]{0}', space=sflag, size = 0x4, scoped, tag = 'scoped memory for upsample_forward.1']
    #allocation7 [shape = 'u8[512]{0}', space=vmem, size = 0x400, scoped, tag = 'input window, operand 2, single buffered']
    #allocation8 [shape = 'u8[262144]{0}', space=vmem, size = 0x40000, scoped, tag = 'output window, operand 0']
    %8 = vsyncpa [#allocation3], 0
    %s9 = scalar_lea.sflag [#allocation3], 1
    %10 = vsyncpa %s9, 0
    %11 = vsyncpa [#allocation6], 0
    %12 = vsyncpa [#allocation4], 0
    %s13 = scalar_lea.sflag [#allocation4], 1
    %14 = vsyncpa %s13, 0
    loop: start=0, step=1, limit=10
    $region2: #{upsample_forward.1} parent=1 // loop_pre_header
      _
    $region3: #{upsample_forward.1} parent=1 // loop_header
      %s16 = sphi 0, %s20
      %p17 = scmp.ge.s32.totalorder %s16, 10
      %s23 = sphi 0, %s35
      %s24 = sphi 0, %s31
      %s25 = sphi 0, %s23
      %s26 = sphi 0, %s24
      %s27 = sphi 0, %s25
      %s28 = sphi 0, %s26
      %s38 = sphi 0, %s40
      %s41 = sphi 0, %s38
      %s42 = sphi 0, %s41
      %s58 = sphi 0, %s42
      %s62 = sphi 0, %s62
      %s64 = sphi 0, %s62
      %s65 = sphi 0, %s64
      %s79 = sphi 0, %s65
      %s83 = sphi 0, %s83
      %s85 = sphi 0, %s83
      %s86 = sphi 0, %s85
      %s100 = sphi 0, %s86
      %s108 = sphi 0, %s110
      %s111 = sphi 0, %s108
      %s112 = sphi 0, %s111
      %s128 = sphi 0, %s112
    $region4: #{upsample_forward.1} parent=1 // loop_header_branch
      %19 = sbr.rel (%p17) target = $region8
    $region5: #{upsample_forward.1} parent=1 // loop_body
      %s21 = ssub.s32 %s16, 1
      %s22 = ssub.s32 %s16, 2
      %s29 = sadd.s32 1, %s24
      %p30 = scmp.ge.s32.totalorder %s29, 4
      %s31 = scalar_select %p30, 0, %s29
      %s32 = sadd.s32 1, %s23
      %s33 = scalar_select %p30, %s32, %s23
      %p34 = scmp.ge.s32.totalorder %s33, 2
      %s35 = scalar_select %p34, 0, %s33
      %s36 = ssub.s32 %s23, %s35
      %p37 = scmp.eq.s32.totalorder %s36, 0
      %s39 = sadd.s32 %s38, 1
      %s40 = scalar_select %p37, %s38, %s39
      %p43 = pneg %p37
      %p44 = scmp.eq.s32.totalorder %s16, 7
      %p45 = por %p43, %p44
      %p46 = scmp.ne.s32.totalorder %s38, %s41
      %p47 = scmp.eq.s32.totalorder %s16, 0
      %p48 = por %p46, %p47
      %p49 = scmp.ne.s32.totalorder %s38, %s41
      %p50 = scmp.eq.s32.totalorder %s21, 7
      %p51 = por %p49, %p50
      %p52 = scmp.ne.s32.totalorder %s41, %s42
      %p53 = scmp.eq.s32.totalorder %s21, 0
      %p54 = por %p52, %p53
      %p55 = scmp.ne.s32.totalorder %s41, %s42
      %p56 = scmp.eq.s32.totalorder %s22, 7
      %p57 = por %p55, %p56
      %p59 = scmp.ne.s32.totalorder %s42, %s58
      %p60 = scmp.eq.s32.totalorder %s22, 0
      %p61 = por %p59, %p60
      %s63 = sadd.s32 %s62, 1
      %p66 = scmp.eq.s32.totalorder %s16, 7
      %p67 = scmp.ne.s32.totalorder %s62, %s64
      %p68 = scmp.eq.s32.totalorder %s16, 0
      %p69 = por %p67, %p68
      %p70 = scmp.ne.s32.totalorder %s62, %s64
      %p71 = scmp.eq.s32.totalorder %s21, 7
      %p72 = por %p70, %p71
      %p73 = scmp.ne.s32.totalorder %s64, %s65
      %p74 = scmp.eq.s32.totalorder %s21, 0
      %p75 = por %p73, %p74
      %p76 = scmp.ne.s32.totalorder %s64, %s65
      %p77 = scmp.eq.s32.totalorder %s22, 7
      %p78 = por %p76, %p77
      %p80 = scmp.ne.s32.totalorder %s65, %s79
      %p81 = scmp.eq.s32.totalorder %s22, 0
      %p82 = por %p80, %p81
      %s84 = sadd.s32 %s83, 1
      %p87 = scmp.eq.s32.totalorder %s16, 7
      %p88 = scmp.ne.s32.totalorder %s83, %s85
      %p89 = scmp.eq.s32.totalorder %s16, 0
      %p90 = por %p88, %p89
      %p91 = scmp.ne.s32.totalorder %s83, %s85
      %p92 = scmp.eq.s32.totalorder %s21, 7
      %p93 = por %p91, %p92
      %p94 = scmp.ne.s32.totalorder %s85, %s86
      %p95 = scmp.eq.s32.totalorder %s21, 0
      %p96 = por %p94, %p95
      %p97 = scmp.ne.s32.totalorder %s85, %s86
      %p98 = scmp.eq.s32.totalorder %s22, 7
      %p99 = por %p97, %p98
      %p101 = scmp.ne.s32.totalorder %s86, %s100
      %p102 = scmp.eq.s32.totalorder %s22, 0
      %p103 = por %p101, %p102
      %s104 = ssub.s32 %s23, %s35
      %s105 = ssub.s32 %s24, %s31
      %s106 = sor.u32 %s104, %s105
      %p107 = scmp.eq.s32.totalorder %s106, 0
      %s109 = sadd.s32 %s108, 1
      %s110 = scalar_select %p107, %s108, %s109
      %p113 = pneg %p107
      %p114 = scmp.eq.s32.totalorder %s16, 7
      %p115 = por %p113, %p114
      %p116 = scmp.ne.s32.totalorder %s108, %s111
      %p117 = scmp.eq.s32.totalorder %s16, 0
      %p118 = por %p116, %p117
      %p119 = scmp.ne.s32.totalorder %s108, %s111
      %p120 = scmp.eq.s32.totalorder %s21, 7
      %p121 = por %p119, %p120
      %p122 = scmp.ne.s32.totalorder %s111, %s112
      %p123 = scmp.eq.s32.totalorder %s21, 0
      %p124 = por %p122, %p123
      %p125 = scmp.ne.s32.totalorder %s111, %s112
      %p126 = scmp.eq.s32.totalorder %s22, 7
      %p127 = por %p125, %p126
      %p129 = scmp.ne.s32.totalorder %s112, %s128
      %p130 = scmp.eq.s32.totalorder %s22, 0
      %p131 = por %p129, %p130
      %p132 = scmp.le.s32.totalorder 1, %s16
      %p133 = scmp.lt.s32.totalorder %s16, 9
      %p134 = pnand %p132, %p133
      %p135 = pneg %p134
      // Predicated region
      $region9: #{upsample_forward.1} parent=5 // pred_check
        _
      $region10: #{upsample_forward.1} parent=5 // pred_check_branch
        %137 = sbr.rel (%p134) target = $region12
      $region11: #{upsample_forward.1} parent=5 // pred_region
        %s138 = ssub.s32 %s16, 1
        // Predicated region
        $region13: #{upsample_forward.1} parent=11 // pred_check
          %p139 = pneg %p75
        $region14: #{upsample_forward.1} parent=11 // pred_check_branch
          %141 = sbr.rel (%p139) target = $region16
        $region15: #{upsample_forward.1} parent=11 // pred_region
          %s143 = ssub.s32 512, 512
          %144 = vsyncadd [#allocation6], %s143
          %s145 = sshll.u32 [#allocation5], 4
          %s146 = int_to_ptr.vmem [resolvable:$true] %s145
          %151 = dma.hbm_to_vmem [thread:$0]  %s1, 512, %s146, [#allocation6], 32, 32, 2
        $region16: #{upsample_forward.1} parent=11 // pred_fallthru
          _
        // Predicated region
        $region17: #{upsample_forward.1} parent=11 // pred_check
          %p152 = pneg %p96
        $region18: #{upsample_forward.1} parent=11 // pred_check_branch
          %154 = sbr.rel (%p152) target = $region20
        $region19: #{upsample_forward.1} parent=11 // pred_region
          %s156 = ssub.s32 16, 16
          %157 = vsyncadd [#allocation6], %s156
          %s159 = sshll.u32 [#allocation7], 4
          %s160 = int_to_ptr.vmem [resolvable:$true] %s159
          %162 = dma.hbm_to_vmem [thread:$0]  %s2, 16, %s160, [#allocation6]
        $region20: #{upsample_forward.1} parent=11 // pred_fallthru
          _
      $region12: #{upsample_forward.1} parent=5 // pred_fallthru
        _
      %p163 = scmp.lt.s32.totalorder %s16, 8
      // Predicated region
      $region21: #{upsample_forward.1} parent=5 // pred_check
        %p164 = pneg %p163
      $region22: #{upsample_forward.1} parent=5 // pred_check_branch
        %166 = sbr.rel (%p164) target = $region24
      $region23: #{upsample_forward.1} parent=5 // pred_region
        // Predicated region
        $region25: #{upsample_forward.1} parent=23 // pred_check
          %p167 = pneg %p48
        $region26: #{upsample_forward.1} parent=23 // pred_check_branch
          %169 = sbr.rel (%p167) target = $region28
        $region27: #{upsample_forward.1} parent=23 // pred_region
          %s170 = sand.u32 %s38, 1
          %s171 = scalar_lea.sflag [#allocation3], %s170
          %s172 = sand.u32 %s38, 1
          %s173 = smul.addr %s172, 216
          %s174 = scalar_lea.vmem [#allocation2], %s173
          %s176 = ssub.s32 3456, 3456
          %177 = vsyncadd %s171, %s176
          %s178 = smul.addr %s23, 54
          %s179 = smul.addr %s178, 64
          %s180 = scalar_lea.hbm %s0, %s179
          %s181 = sshll.u32 %s174, 4
          %s182 = int_to_ptr.vmem [resolvable:$true] %s181
          %187 = dma.hbm_to_vmem [thread:$0]  %s180, 3456, %s182, %s171, 64, 64, 4
        $region28: #{upsample_forward.1} parent=23 // pred_fallthru
          _
      $region24: #{upsample_forward.1} parent=5 // pred_fallthru
        _
      %p188 = scmp.le.s32.totalorder 1, %s16
      %p189 = scmp.lt.s32.totalorder %s16, 9
      %p190 = pnand %p188, %p189
      %p191 = pneg %p190
      // Predicated region
      $region29: #{upsample_forward.1} parent=5 // pred_check
        _
      $region30: #{upsample_forward.1} parent=5 // pred_check_branch
        %193 = sbr.rel (%p190) target = $region32
      $region31: #{upsample_forward.1} parent=5 // pred_region
        %s194 = ssub.s32 %s16, 1
        %s195 = sand.u32 %s41, 1
        %s196 = scalar_lea.sflag [#allocation3], %s195
        %s197 = sand.u32 %s41, 1
        %s198 = smul.addr %s197, 216
        %s199 = scalar_lea.vmem [#allocation2], %s198
        // Predicated region
        $region33: #{upsample_forward.1} parent=31 // pred_check
          %p200 = pneg %p54
        $region34: #{upsample_forward.1} parent=31 // pred_check_branch
          %202 = sbr.rel (%p200) target = $region36
        $region35: #{upsample_forward.1} parent=31 // pred_region
          %203 = dma.done %s196, 3456
        $region36: #{upsample_forward.1} parent=31 // pred_fallthru
          _
        // Predicated region
        $region37: #{upsample_forward.1} parent=31 // pred_check
          %p204 = pneg %p75
        $region38: #{upsample_forward.1} parent=31 // pred_check_branch
          %206 = sbr.rel (%p204) target = $region40
        $region39: #{upsample_forward.1} parent=31 // pred_region
          %207 = dma.done [#allocation6], 512
        $region40: #{upsample_forward.1} parent=31 // pred_fallthru
          _
        // Predicated region
        $region41: #{upsample_forward.1} parent=31 // pred_check
          %p208 = pneg %p96
        $region42: #{upsample_forward.1} parent=31 // pred_check_branch
          %210 = sbr.rel (%p208) target = $region44
        $region43: #{upsample_forward.1} parent=31 // pred_region
          %211 = dma.done [#allocation6], 16
        $region44: #{upsample_forward.1} parent=31 // pred_fallthru
          _
        %s212 = sand.u32 %s41, 1
        %s213 = scalar_lea.sflag [#allocation3], %s212
        %s214 = sand.u32 %s41, 1
        %s215 = smul.addr %s214, 216
        %s216 = scalar_lea.vmem [#allocation2], %s215
        %p217 = pneg %p54
        %p218 = pneg %p51
        %p219 = pneg %p75
        %p220 = pneg %p72
        %p221 = pneg %p96
        %p222 = pneg %p93
        %p223 = pneg %p124
        %p224 = pneg %p121
        %s225 = sand.u32 %s111, 1
        %s226 = scalar_lea.sflag [#allocation4], %s225
        %s227 = sand.u32 %s111, 1
        %s228 = smul.addr %s227, 256
        %s229 = scalar_lea.vmem [#allocation8], %s228
        %s230 = smul.u32 4, %s26
        %s232 = smul.u32 %s26, 4
        %s233 = smul.u32 %s232, 3
        %s234 = smul.addr %s233, 4
        %s235 = scalar_lea.vmem %s199, %s234 [#allocation2]
        %v236 = vld [vmem:[%s235] sm:$0xf]
        %v237 = vld [vmem:[%s235 + $0x4] sm:$0xf]
        %v238 = vld [vmem:[%s235 + $0xc] sm:$0xf]
        %v239 = vld [vmem:[%s235 + $0x10] sm:$0xf]
        %v240 = vld [vmem:[%s235 + $0x18] sm:$0xf]
        %v241 = vld [vmem:[%s235 + $0x1c] sm:$0xf]
        %v242 = vld [vmem:[%s235 + $0x24] sm:$0xf]
        %v243 = vld [vmem:[%s235 + $0x28] sm:$0xf]
        %v244 = vld [vmem:[%s235 + $0x30] sm:$0xf]
        %v245 = vld [vmem:[%s235 + $0x34] sm:$0xf]
        %v246 = vld [vmem:[%s235 + $0x3c] sm:$0xf]
        %v247 = vld [vmem:[%s235 + $0x40] sm:$0xf]
        %v248 = vld [vmem:[%s235 + $0x8] sm:$0x1]
        %v249 = vld [vmem:[%s235 + $0x14] sm:$0x1]
        %v250 = vld [vmem:[%s235 + $0x20] sm:$0x1]
        %v251 = vld [vmem:[%s235 + $0x2c] sm:$0x1]
        %v252 = vld [vmem:[%s235 + $0x38] sm:$0x1]
        %v253 = vld [vmem:[%s235 + $0x44] sm:$0x1]
        %v254 = vld [vmem:[%s235] sm:$0xe]
        %v255 = vld [vmem:[%s235 + $0xc] sm:$0xe]
        %v256 = vld [vmem:[%s235 + $0x18] sm:$0xe]
        %v257 = vld [vmem:[%s235 + $0x24] sm:$0xe]
        %v258 = vld [vmem:[%s235 + $0x30] sm:$0xe]
        %v259 = vld [vmem:[%s235 + $0x3c] sm:$0xe]
        %v260 = vld [vmem:[#allocation7] sm:$0x1]
        %vm261 = vsmask.f32 3328
        %vm262 = vsmask.f32 7440
        %vm263 = vmor %vm261, %vm262
        %v265 = vshrl.u32 %v236, 16
        %v267 = vrot.slane %v265, 4
        %v268 = vshll.u32 %v236, 16
        %v270 = vrot.slane %v268, 5
        %v271 = vor.u32 %v267, %v270
        %v272 = vrot.slane %v271, 4
        %v274 = vshll.u32 %v237, 16
        %v276 = vrot.slane %v274, 5
        %v277 = vsel %vm263, %v272, %v276
        %v278 = vshrl.u32 %v237, 16
        %v280 = vrot.slane %v278, 4
        %v281 = vor.u32 %v280, %v276
        %v282 = vrot.slane %v281, 4
        %v284 = vshll.u32 %v248, 16
        %v286 = vrot.slane %v284, 5
        %v287 = vsel %vm263, %v282, %v286
        %v289 = vshrl.u32 %v238, 16
        %v291 = vrot.slane %v289, 4
        %v292 = vshll.u32 %v238, 16
        %v294 = vrot.slane %v292, 5
        %v295 = vor.u32 %v291, %v294
        %v296 = vrot.slane %v295, 4
        %v298 = vshll.u32 %v239, 16
        %v300 = vrot.slane %v298, 5
        %v301 = vsel %vm263, %v296, %v300
        %v302 = vshrl.u32 %v239, 16
        %v304 = vrot.slane %v302, 4
        %v305 = vor.u32 %v304, %v300
        %v306 = vrot.slane %v305, 4
        %v308 = vshll.u32 %v249, 16
        %v310 = vrot.slane %v308, 5
        %v311 = vsel %vm263, %v306, %v310
        %v313 = vshrl.u32 %v240, 16
        %v315 = vrot.slane %v313, 4
        %v316 = vshll.u32 %v240, 16
        %v318 = vrot.slane %v316, 5
        %v319 = vor.u32 %v315, %v318
        %v320 = vrot.slane %v319, 4
        %v322 = vshll.u32 %v241, 16
        %v324 = vrot.slane %v322, 5
        %v325 = vsel %vm263, %v320, %v324
        %v326 = vshrl.u32 %v241, 16
        %v328 = vrot.slane %v326, 4
        %v329 = vor.u32 %v328, %v324
        %v330 = vrot.slane %v329, 4
        %v332 = vshll.u32 %v250, 16
        %v334 = vrot.slane %v332, 5
        %v335 = vsel %vm263, %v330, %v334
        %v337 = vshrl.u32 %v242, 16
        %v339 = vrot.slane %v337, 4
        %v340 = vshll.u32 %v242, 16
        %v342 = vrot.slane %v340, 5
        %v343 = vor.u32 %v339, %v342
        %v344 = vrot.slane %v343, 4
        %v346 = vshll.u32 %v243, 16
        %v348 = vrot.slane %v346, 5
        %v349 = vsel %vm263, %v344, %v348
        %v350 = vshrl.u32 %v243, 16
        %v352 = vrot.slane %v350, 4
        %v353 = vor.u32 %v352, %v348
        %v354 = vrot.slane %v353, 4
        %v356 = vshll.u32 %v251, 16
        %v358 = vrot.slane %v356, 5
        %v359 = vsel %vm263, %v354, %v358
        %v361 = vshrl.u32 %v244, 16
        %v363 = vrot.slane %v361, 4
        %v364 = vshll.u32 %v244, 16
        %v366 = vrot.slane %v364, 5
        %v367 = vor.u32 %v363, %v366
        %v368 = vrot.slane %v367, 4
        %v370 = vshll.u32 %v245, 16
        %v372 = vrot.slane %v370, 5
        %v373 = vsel %vm263, %v368, %v372
        %v374 = vshrl.u32 %v245, 16
        %v376 = vrot.slane %v374, 4
        %v377 = vor.u32 %v376, %v372
        %v378 = vrot.slane %v377, 4
        %v380 = vshll.u32 %v252, 16
        %v382 = vrot.slane %v380, 5
        %v383 = vsel %vm263, %v378, %v382
        %v384 = vld [vmem:[#allocation5] sm:$0x3]
        %s385 = scalar_lea.vmem [#allocation5], 2
        %v386 = vld [vmem:[%s385] sm:$0x3]
        %v387 = vunpack.c.l.b16 %v277
        %v388 = vunpack.c.l.b16 %v287
        %v389 = vunpack.c.l.b16 %v301
        %v390 = vunpack.c.l.b16 %v311
        %v391 = vunpack.c.l.b16 %v325
        %v392 = vunpack.c.l.b16 %v335
        %v393 = vunpack.c.l.b16 %v349
        %v394 = vunpack.c.l.b16 %v359
        %v395 = vpack.c.b16 %v388, %v387
        %v396 = vpack.c.b16 %v390, %v389
        %v397 = vpack.c.b16 %v392, %v391
        %v398 = vpack.c.b16 %v394, %v393
        %vm399 = vcmask 31744
        %v401 = vsel %vm399, %v395, 0
        %v404 = vsel %vm399, %v396, 0
        %v407 = vsel %vm399, %v397, 0
        %v410 = vsel %vm399, %v398, 0
        %vm412 = vcmask 1041408
        %v414 = vsel %vm412, %v386, 0
        %416 = vmatprep.subr.bf16.mxu0 0
        %417 = vmatpush1.bf16.msra.mxu0 %v414
        %418 = vmatprep.subr.bf16.mxu0 0
        %419 = vmatpush1.bf16.msra.mxu0 0
        %420 = vmatprep.subr.bf16.mxu0 0
        %421 = vmatpush1.bf16.msra.mxu0 0
        %422 = vmatprep.subr.bf16.mxu0 0
        %423 = vmatpush1.bf16.msra.mxu0 0
        %424 = vmatprep.subr.bf16.mxu0 0
        %425 = vmatpush1.bf16.msra.mxu0 0
        %426 = vmatprep.subr.bf16.mxu0 0
        %427 = vmatpush1.bf16.msra.mxu0 0
        %428 = vmatprep.subr.bf16.mxu0 0
        %429 = vmatpush1.bf16.msra.mxu0 0
        %430 = vmatprep.subr.bf16.mxu0 0
        %431 = vmatpush1.bf16.msra.mxu0 0
        %432 = vmatprep.subr.bf16.mxu0 0
        %433 = vmatpush1.bf16.msra.mxu0 0
        %434 = vmatprep.subr.bf16.mxu0 0
        %435 = vmatpush1.bf16.msra.mxu0 0
        %436 = vmatprep.subr.bf16.mxu0 0
        %437 = vmatpush1.bf16.msra.mxu0 0
        %438 = vmatprep.subr.bf16.mxu0 0
        %439 = vmatpush1.bf16.msra.mxu0 0
        %440 = vmatprep.subr.bf16.mxu0 0
        %441 = vmatpush1.bf16.msra.mxu0 0
        %442 = vmatprep.subr.bf16.mxu0 0
        %443 = vmatpush1.bf16.msra.mxu0 0
        %444 = vmatprep.subr.bf16.mxu0 0
        %445 = vmatpush1.bf16.msra.mxu0 0
        %446 = vmatprep.subr.bf16.mxu0 0
        %447 = vmatpush1.bf16.msra.mxu0 0
        %448 = vmatprep.mubr.bf16.mxu0 0
        %449 = vmatmul.mubr.bf16.gmra.mrb[0].mxu0 %v401
        %v450 = vpop.f32.mrb[0].mxu0
        %v451 = vadd.f32 0.0, %v450
        %v452 = vpop.f32.mrb[0].mxu0
        %v453 = vpop.f32.mrb[0].mxu0
        %v454 = vadd.f32 0.0, %v453
        %v455 = vpop.f32.mrb[0].mxu0
        %456 = vmatprep.mubr.bf16.mxu0 0
        %457 = vmatmul.mubr.bf16.gmra.mrb[0].mxu0 %v404
        %v458 = vpop.f32.mrb[0].mxu0
        %v459 = vadd.f32 0.0, %v458
        %v460 = vpop.f32.mrb[0].mxu0
        %v461 = vpop.f32.mrb[0].mxu0
        %v462 = vadd.f32 0.0, %v461
        %v463 = vpop.f32.mrb[0].mxu0
        %464 = vmatprep.mubr.bf16.mxu0 0
        %465 = vmatmul.mubr.bf16.gmra.mrb[0].mxu0 %v407
        %v466 = vpop.f32.mrb[0].mxu0
        %v467 = vadd.f32 0.0, %v466
        %v468 = vpop.f32.mrb[0].mxu0
        %v469 = vpop.f32.mrb[0].mxu0
        %v470 = vadd.f32 0.0, %v469
        %v471 = vpop.f32.mrb[0].mxu0
        %472 = vmatprep.mubr.bf16.mxu0 0
        %473 = vmatmul.mubr.bf16.gmra.mrb[0].mxu0 %v410
        %v474 = vpop.f32.mrb[0].mxu0
        %v475 = vadd.f32 0.0, %v474
        %v476 = vpop.f32.mrb[0].mxu0
        %v477 = vpop.f32.mrb[0].mxu0
        %v478 = vadd.f32 0.0, %v477
        %v479 = vpop.f32.mrb[0].mxu0
        %480 = vdwg.mxu0
        %v489 = vunpack.c.l.b16 %v236
        %v490 = vunpack.c.l.b16 %v237
        %v491 = vunpack.c.l.b16 %v238
        %v492 = vunpack.c.l.b16 %v239
        %v493 = vunpack.c.l.b16 %v240
        %v494 = vunpack.c.l.b16 %v241
        %v495 = vunpack.c.l.b16 %v242
        %v496 = vunpack.c.l.b16 %v243
        %v497 = vpack.c.b16 %v490, %v489
        %v498 = vpack.c.b16 %v492, %v491
        %v499 = vpack.c.b16 %v494, %v493
        %v500 = vpack.c.b16 %v496, %v495
        %v502 = vsel %vm399, %v497, 0
        %v505 = vsel %vm399, %v498, 0
        %v508 = vsel %vm399, %v499, 0
        %v511 = vsel %vm399, %v500, 0
        %v514 = vsel %vm412, %v384, 0
        %516 = vmatprep.subr.bf16.mxu0 0
        %517 = vmatpush1.bf16.msra.mxu0 %v514
        %518 = vmatprep.subr.bf16.mxu0 0
        %519 = vmatpush1.bf16.msra.mxu0 0
        %520 = vmatprep.subr.bf16.mxu0 0
        %521 = vmatpush1.bf16.msra.mxu0 0
        %522 = vmatprep.subr.bf16.mxu0 0
        %523 = vmatpush1.bf16.msra.mxu0 0
        %524 = vmatprep.subr.bf16.mxu0 0
        %525 = vmatpush1.bf16.msra.mxu0 0
        %526 = vmatprep.subr.bf16.mxu0 0
        %527 = vmatpush1.bf16.msra.mxu0 0
        %528 = vmatprep.subr.bf16.mxu0 0
        %529 = vmatpush1.bf16.msra.mxu0 0
        %530 = vmatprep.subr.bf16.mxu0 0
        %531 = vmatpush1.bf16.msra.mxu0 0
        %532 = vmatprep.subr.bf16.mxu0 0
        %533 = vmatpush1.bf16.msra.mxu0 0
        %534 = vmatprep.subr.bf16.mxu0 0
        %535 = vmatpush1.bf16.msra.mxu0 0
        %536 = vmatprep.subr.bf16.mxu0 0
        %537 = vmatpush1.bf16.msra.mxu0 0
        %538 = vmatprep.subr.bf16.mxu0 0
        %539 = vmatpush1.bf16.msra.mxu0 0
        %540 = vmatprep.subr.bf16.mxu0 0
        %541 = vmatpush1.bf16.msra.mxu0 0
        %542 = vmatprep.subr.bf16.mxu0 0
        %543 = vmatpush1.bf16.msra.mxu0 0
        %544 = vmatprep.subr.bf16.mxu0 0
        %545 = vmatpush1.bf16.msra.mxu0 0
        %546 = vmatprep.subr.bf16.mxu0 0
        %547 = vmatpush1.bf16.msra.mxu0 0
        %548 = vmatprep.mubr.bf16.mxu0 0
        %549 = vmatmul.mubr.bf16.gmra.mrb[0].mxu0 %v502
        %v550 = vpop.f32.mrb[0].mxu0
        %v551 = vadd.f32 %v451, %v550
        %v552 = vpop.f32.mrb[0].mxu0
        %v553 = vpop.f32.mrb[0].mxu0
        %v554 = vadd.f32 %v454, %v553
        %v555 = vpop.f32.mrb[0].mxu0
        %556 = vmatprep.mubr.bf16.mxu0 0
        %557 = vmatmul.mubr.bf16.gmra.mrb[0].mxu0 %v505
        %v558 = vpop.f32.mrb[0].mxu0
        %v559 = vadd.f32 %v459, %v558
        %v560 = vpop.f32.mrb[0].mxu0
        %v561 = vpop.f32.mrb[0].mxu0
        %v562 = vadd.f32 %v462, %v561
        %v563 = vpop.f32.mrb[0].mxu0
        %564 = vmatprep.mubr.bf16.mxu0 0
        %565 = vmatmul.mubr.bf16.gmra.mrb[0].mxu0 %v508
        %v566 = vpop.f32.mrb[0].mxu0
        %v567 = vadd.f32 %v467, %v566
        %v568 = vpop.f32.mrb[0].mxu0
        %v569 = vpop.f32.mrb[0].mxu0
        %v570 = vadd.f32 %v470, %v569
        %v571 = vpop.f32.mrb[0].mxu0
        %572 = vmatprep.mubr.bf16.mxu0 0
        %573 = vmatmul.mubr.bf16.gmra.mrb[0].mxu0 %v511
        %v574 = vpop.f32.mrb[0].mxu0
        %v575 = vadd.f32 %v475, %v574
        %v576 = vpop.f32.mrb[0].mxu0
        %v577 = vpop.f32.mrb[0].mxu0
        %v578 = vadd.f32 %v478, %v577
        %v579 = vpop.f32.mrb[0].mxu0
        %580 = vdwg.mxu0
        %s581 = scalar_lea.vmem [#allocation5], 4
        %v582 = vld [vmem:[%s581] sm:$0x3]
        %v585 = vunpack.c.l.b16 %v244
        %v586 = vunpack.c.l.b16 %v245
        %v587 = vpack.c.b16 %v586, %v585
        %v589 = vsel %vm399, %v587, 0
        %v592 = vsel %vm412, %v582, 0
        %594 = vmatprep.subr.bf16.mxu0 0
        %595 = vmatpush1.bf16.msra.mxu0 %v592
        %596 = vmatprep.subr.bf16.mxu0 0
        %597 = vmatpush1.bf16.msra.mxu0 0
        %598 = vmatprep.subr.bf16.mxu0 0
        %599 = vmatpush1.bf16.msra.mxu0 0
        %600 = vmatprep.subr.bf16.mxu0 0
        %601 = vmatpush1.bf16.msra.mxu0 0
        %602 = vmatprep.subr.bf16.mxu0 0
        %603 = vmatpush1.bf16.msra.mxu0 0
        %604 = vmatprep.subr.bf16.mxu0 0
        %605 = vmatpush1.bf16.msra.mxu0 0
        %606 = vmatprep.subr.bf16.mxu0 0
        %607 = vmatpush1.bf16.msra.mxu0 0
        %608 = vmatprep.subr.bf16.mxu0 0
        %609 = vmatpush1.bf16.msra.mxu0 0
        %610 = vmatprep.subr.bf16.mxu0 0
        %611 = vmatpush1.bf16.msra.mxu0 0
        %612 = vmatprep.subr.bf16.mxu0 0
        %613 = vmatpush1.bf16.msra.mxu0 0
        %614 = vmatprep.subr.bf16.mxu0 0
        %615 = vmatpush1.bf16.msra.mxu0 0
        %616 = vmatprep.subr.bf16.mxu0 0
        %617 = vmatpush1.bf16.msra.mxu0 0
        %618 = vmatprep.subr.bf16.mxu0 0
        %619 = vmatpush1.bf16.msra.mxu0 0
        %620 = vmatprep.subr.bf16.mxu0 0
        %621 = vmatpush1.bf16.msra.mxu0 0
        %622 = vmatprep.subr.bf16.mxu0 0
        %623 = vmatpush1.bf16.msra.mxu0 0
        %624 = vmatprep.subr.bf16.mxu0 0
        %625 = vmatpush1.bf16.msra.mxu0 0
        %626 = vmatprep.mubr.bf16.mxu0 0
        %627 = vmatmul.mubr.bf16.gmra.mrb[0].mxu0 %v505
        %v628 = vpop.f32.mrb[0].mxu0
        %v629 = vadd.f32 0.0, %v628
        %v630 = vpop.f32.mrb[0].mxu0
        %v631 = vpop.f32.mrb[0].mxu0
        %v632 = vadd.f32 0.0, %v631
        %v633 = vpop.f32.mrb[0].mxu0
        %634 = vmatprep.mubr.bf16.mxu0 0
        %635 = vmatmul.mubr.bf16.gmra.mrb[0].mxu0 %v508
        %v636 = vpop.f32.mrb[0].mxu0
        %v637 = vadd.f32 0.0, %v636
        %v638 = vpop.f32.mrb[0].mxu0
        %v639 = vpop.f32.mrb[0].mxu0
        %v640 = vadd.f32 0.0, %v639
        %v641 = vpop.f32.mrb[0].mxu0
        %642 = vmatprep.mubr.bf16.mxu0 0
        %643 = vmatmul.mubr.bf16.gmra.mrb[0].mxu0 %v511
        %v644 = vpop.f32.mrb[0].mxu0
        %v645 = vadd.f32 0.0, %v644
        %v646 = vpop.f32.mrb[0].mxu0
        %v647 = vpop.f32.mrb[0].mxu0
        %v648 = vadd.f32 0.0, %v647
        %v649 = vpop.f32.mrb[0].mxu0
        %650 = vmatprep.mubr.bf16.mxu0 0
        %651 = vmatmul.mubr.bf16.gmra.mrb[0].mxu0 %v589
        %v652 = vpop.f32.mrb[0].mxu0
        %v653 = vadd.f32 0.0, %v652
        %v654 = vpop.f32.mrb[0].mxu0
        %v655 = vpop.f32.mrb[0].mxu0
        %v656 = vadd.f32 0.0, %v655
        %v657 = vpop.f32.mrb[0].mxu0
        %658 = vdwg.mxu0
        %v659 = vadd.f32 %v551, %v629
        %v660 = vadd.f32 %v554, %v632
        %v661 = vadd.f32 %v559, %v637
        %v662 = vadd.f32 %v562, %v640
        %v663 = vadd.f32 %v567, %v645
        %v664 = vadd.f32 %v570, %v648
        %v665 = vadd.f32 %v575, %v653
        %v666 = vadd.f32 %v578, %v656
        %s667 = scalar_lea.vmem [#allocation5], 6
        %v668 = vld [vmem:[%s667] sm:$0x3]
        %v669 = vunpack.c.l.b16 %v373
        %v670 = vunpack.c.l.b16 %v383
        %v671 = vpack.c.b16 %v670, %v669
        %v673 = vsel %vm399, %v671, 0
        %v676 = vsel %vm412, %v668, 0
        %678 = vmatprep.subr.bf16.mxu0 0
        %679 = vmatpush1.bf16.msra.mxu0 %v676
        %680 = vmatprep.subr.bf16.mxu0 0
        %681 = vmatpush1.bf16.msra.mxu0 0
        %682 = vmatprep.subr.bf16.mxu0 0
        %683 = vmatpush1.bf16.msra.mxu0 0
        %684 = vmatprep.subr.bf16.mxu0 0
        %685 = vmatpush1.bf16.msra.mxu0 0
        %686 = vmatprep.subr.bf16.mxu0 0
        %687 = vmatpush1.bf16.msra.mxu0 0
        %688 = vmatprep.subr.bf16.mxu0 0
        %689 = vmatpush1.bf16.msra.mxu0 0
        %690 = vmatprep.subr.bf16.mxu0 0
        %691 = vmatpush1.bf16.msra.mxu0 0
        %692 = vmatprep.subr.bf16.mxu0 0
        %693 = vmatpush1.bf16.msra.mxu0 0
        %694 = vmatprep.subr.bf16.mxu0 0
        %695 = vmatpush1.bf16.msra.mxu0 0
        %696 = vmatprep.subr.bf16.mxu0 0
        %697 = vmatpush1.bf16.msra.mxu0 0
        %698 = vmatprep.subr.bf16.mxu0 0
        %699 = vmatpush1.bf16.msra.mxu0 0
        %700 = vmatprep.subr.bf16.mxu0 0
        %701 = vmatpush1.bf16.msra.mxu0 0
        %702 = vmatprep.subr.bf16.mxu0 0
        %703 = vmatpush1.bf16.msra.mxu0 0
        %704 = vmatprep.subr.bf16.mxu0 0
        %705 = vmatpush1.bf16.msra.mxu0 0
        %706 = vmatprep.subr.bf16.mxu0 0
        %707 = vmatpush1.bf16.msra.mxu0 0
        %708 = vmatprep.subr.bf16.mxu0 0
        %709 = vmatpush1.bf16.msra.mxu0 0
        %710 = vmatprep.mubr.bf16.mxu0 0
        %711 = vmatmul.mubr.bf16.gmra.mrb[0].mxu0 %v404
        %v712 = vpop.f32.mrb[0].mxu0
        %v713 = vadd.f32 0.0, %v712
        %v714 = vpop.f32.mrb[0].mxu0
        %v715 = vpop.f32.mrb[0].mxu0
        %v716 = vadd.f32 0.0, %v715
        %v717 = vpop.f32.mrb[0].mxu0
        %718 = vmatprep.mubr.bf16.mxu0 0
        %719 = vmatmul.mubr.bf16.gmra.mrb[0].mxu0 %v407
        %v720 = vpop.f32.mrb[0].mxu0
        %v721 = vadd.f32 0.0, %v720
        %v722 = vpop.f32.mrb[0].mxu0
        %v723 = vpop.f32.mrb[0].mxu0
        %v724 = vadd.f32 0.0, %v723
        %v725 = vpop.f32.mrb[0].mxu0
        %726 = vmatprep.mubr.bf16.mxu0 0
        %727 = vmatmul.mubr.bf16.gmra.mrb[0].mxu0 %v410
        %v728 = vpop.f32.mrb[0].mxu0
        %v729 = vadd.f32 0.0, %v728
        %v730 = vpop.f32.mrb[0].mxu0
        %v731 = vpop.f32.mrb[0].mxu0
        %v732 = vadd.f32 0.0, %v731
        %v733 = vpop.f32.mrb[0].mxu0
        %734 = vmatprep.mubr.bf16.mxu0 0
        %735 = vmatmul.mubr.bf16.gmra.mrb[0].mxu0 %v673
        %v736 = vpop.f32.mrb[0].mxu0
        %v737 = vadd.f32 0.0, %v736
        %v738 = vpop.f32.mrb[0].mxu0
        %v739 = vpop.f32.mrb[0].mxu0
        %v740 = vadd.f32 0.0, %v739
        %v741 = vpop.f32.mrb[0].mxu0
        %742 = vdwg.mxu0
        %v743 = vadd.f32 %v659, %v713
        %v744 = vadd.f32 %v660, %v716
        %v745 = vadd.f32 %v661, %v721
        %v746 = vadd.f32 %v662, %v724
        %v747 = vadd.f32 %v663, %v729
        %v748 = vadd.f32 %v664, %v732
        %v749 = vadd.f32 %v665, %v737
        %v750 = vadd.f32 %v666, %v740
        %v752 = vlaneseq
        %v753 = vshrl.u32 %v752, 7
        %v754 = vsub.s32 0, %v753
        %v755 = vrot.slane %v260, %v754
        %v757 = vadd.f32 %v743, %v755
        %v758 = vadd.f32 %v744, %v755
        %v759 = vadd.f32 %v745, %v755
        %v760 = vadd.f32 %v746, %v755
        %v761 = vadd.f32 %v747, %v755
        %v762 = vadd.f32 %v748, %v755
        %v763 = vadd.f32 %v749, %v755
        %v764 = vadd.f32 %v750, %v755
        %765 = vst.msk [vmem:[%s229] sm:$0xff] %vm399, %v757
        %766 = vst.msk [vmem:[%s229 + $0x8] sm:$0xff] %vm399, %v758
        %767 = vst.msk [vmem:[%s229 + $0x10] sm:$0xff] %vm399, %v759
        %768 = vst.msk [vmem:[%s229 + $0x18] sm:$0xff] %vm399, %v760
        %769 = vst.msk [vmem:[%s229 + $0x20] sm:$0xff] %vm399, %v761
        %770 = vst.msk [vmem:[%s229 + $0x28] sm:$0xff] %vm399, %v762
        %771 = vst.msk [vmem:[%s229 + $0x30] sm:$0xff] %vm399, %v763
        %772 = vst.msk [vmem:[%s229 + $0x38] sm:$0xff] %vm399, %v764
        %vm781 = vcmask 1042432
        %vm782 = vcmask 1046532
        %vm783 = vmor %vm781, %vm782
        %v784 = vrot.slane %v254, 5
        %v785 = vrot.slane %v784, 4
        %v786 = vrot.slane %v237, 5
        %v787 = vsel %vm783, %v785, %v786
        %v788 = vrot.slane %v786, 4
        %v789 = vrot.slane %v248, 5
        %v790 = vsel %vm783, %v788, %v789
        %v791 = vrot.slane %v255, 5
        %v792 = vrot.slane %v791, 4
        %v793 = vrot.slane %v239, 5
        %v794 = vsel %vm783, %v792, %v793
        %v795 = vrot.slane %v793, 4
        %v796 = vrot.slane %v249, 5
        %v797 = vsel %vm783, %v795, %v796
        %v798 = vrot.slane %v256, 5
        %v799 = vrot.slane %v798, 4
        %v800 = vrot.slane %v241, 5
        %v801 = vsel %vm783, %v799, %v800
        %v802 = vrot.slane %v800, 4
        %v803 = vrot.slane %v250, 5
        %v804 = vsel %vm783, %v802, %v803
        %v805 = vrot.slane %v257, 5
        %v806 = vrot.slane %v805, 4
        %v807 = vrot.slane %v243, 5
        %v808 = vsel %vm783, %v806, %v807
        %v809 = vrot.slane %v807, 4
        %v810 = vrot.slane %v251, 5
        %v811 = vsel %vm783, %v809, %v810
        %v814 = vrot.slane %v258, 5
        %v815 = vrot.slane %v814, 4
        %v816 = vrot.slane %v245, 5
        %v817 = vsel %vm783, %v815, %v816
        %v818 = vrot.slane %v816, 4
        %v819 = vrot.slane %v252, 5
        %v820 = vsel %vm783, %v818, %v819
        %s821 = scalar_lea.vmem [#allocation5], 8
        %v822 = vld [vmem:[%s821] sm:$0x3]
        %s823 = scalar_lea.vmem [#allocation5], 10
        %v824 = vld [vmem:[%s823] sm:$0x3]
        %v825 = vunpack.c.l.b16 %v787
        %v826 = vunpack.c.l.b16 %v790
        %v827 = vunpack.c.l.b16 %v794
        %v828 = vunpack.c.l.b16 %v797
        %v829 = vunpack.c.l.b16 %v801
        %v830 = vunpack.c.l.b16 %v804
        %v831 = vunpack.c.l.b16 %v808
        %v832 = vunpack.c.l.b16 %v811
        %v833 = vpack.c.b16 %v826, %v825
        %v834 = vpack.c.b16 %v828, %v827
        %v835 = vpack.c.b16 %v830, %v829
        %v836 = vpack.c.b16 %v832, %v831
        %v838 = vsel %vm399, %v833, 0
        %v841 = vsel %vm399, %v834, 0
        %v844 = vsel %vm399, %v835, 0
        %v847 = vsel %vm399, %v836, 0
        %v850 = vsel %vm412, %v824, 0
        %852 = vmatprep.subr.bf16.mxu0 0
        %853 = vmatpush1.bf16.msra.mxu0 %v850
        %854 = vmatprep.subr.bf16.mxu0 0
        %855 = vmatpush1.bf16.msra.mxu0 0
        %856 = vmatprep.subr.bf16.mxu0 0
        %857 = vmatpush1.bf16.msra.mxu0 0
        %858 = vmatprep.subr.bf16.mxu0 0
        %859 = vmatpush1.bf16.msra.mxu0 0
        %860 = vmatprep.subr.bf16.mxu0 0
        %861 = vmatpush1.bf16.msra.mxu0 0
        %862 = vmatprep.subr.bf16.mxu0 0
        %863 = vmatpush1.bf16.msra.mxu0 0
        %864 = vmatprep.subr.bf16.mxu0 0
        %865 = vmatpush1.bf16.msra.mxu0 0
        %866 = vmatprep.subr.bf16.mxu0 0
        %867 = vmatpush1.bf16.msra.mxu0 0
        %868 = vmatprep.subr.bf16.mxu0 0
        %869 = vmatpush1.bf16.msra.mxu0 0
        %870 = vmatprep.subr.bf16.mxu0 0
        %871 = vmatpush1.bf16.msra.mxu0 0
        %872 = vmatprep.subr.bf16.mxu0 0
        %873 = vmatpush1.bf16.msra.mxu0 0
        %874 = vmatprep.subr.bf16.mxu0 0
        %875 = vmatpush1.bf16.msra.mxu0 0
        %876 = vmatprep.subr.bf16.mxu0 0
        %877 = vmatpush1.bf16.msra.mxu0 0
        %878 = vmatprep.subr.bf16.mxu0 0
        %879 = vmatpush1.bf16.msra.mxu0 0
        %880 = vmatprep.subr.bf16.mxu0 0
        %881 = vmatpush1.bf16.msra.mxu0 0
        %882 = vmatprep.subr.bf16.mxu0 0
        %883 = vmatpush1.bf16.msra.mxu0 0
        %884 = vmatprep.mubr.bf16.mxu0 0
        %885 = vmatmul.mubr.bf16.gmra.mrb[0].mxu0 %v838
        %v886 = vpop.f32.mrb[0].mxu0
        %v887 = vadd.f32 0.0, %v886
        %v888 = vpop.f32.mrb[0].mxu0
        %v889 = vpop.f32.mrb[0].mxu0
        %v890 = vadd.f32 0.0, %v889
        %v891 = vpop.f32.mrb[0].mxu0
        %892 = vmatprep.mubr.bf16.mxu0 0
        %893 = vmatmul.mubr.bf16.gmra.mrb[0].mxu0 %v841
        %v894 = vpop.f32.mrb[0].mxu0
        %v895 = vadd.f32 0.0, %v894
        %v896 = vpop.f32.mrb[0].mxu0
        %v897 = vpop.f32.mrb[0].mxu0
        %v898 = vadd.f32 0.0, %v897
        %v899 = vpop.f32.mrb[0].mxu0
        %900 = vmatprep.mubr.bf16.mxu0 0
        %901 = vmatmul.mubr.bf16.gmra.mrb[0].mxu0 %v844
        %v902 = vpop.f32.mrb[0].mxu0
        %v903 = vadd.f32 0.0, %v902
        %v904 = vpop.f32.mrb[0].mxu0
        %v905 = vpop.f32.mrb[0].mxu0
        %v906 = vadd.f32 0.0, %v905
        %v907 = vpop.f32.mrb[0].mxu0
        %908 = vmatprep.mubr.bf16.mxu0 0
        %909 = vmatmul.mubr.bf16.gmra.mrb[0].mxu0 %v847
        %v910 = vpop.f32.mrb[0].mxu0
        %v911 = vadd.f32 0.0, %v910
        %v912 = vpop.f32.mrb[0].mxu0
        %v913 = vpop.f32.mrb[0].mxu0
        %v914 = vadd.f32 0.0, %v913
        %v915 = vpop.f32.mrb[0].mxu0
        %916 = vdwg.mxu0
        %v918 = vsel %vm412, %v822, 0
        %920 = vmatprep.subr.bf16.mxu0 0
        %921 = vmatpush1.bf16.msra.mxu0 %v918
        %922 = vmatprep.subr.bf16.mxu0 0
        %923 = vmatpush1.bf16.msra.mxu0 0
        %924 = vmatprep.subr.bf16.mxu0 0
        %925 = vmatpush1.bf16.msra.mxu0 0
        %926 = vmatprep.subr.bf16.mxu0 0
        %927 = vmatpush1.bf16.msra.mxu0 0
        %928 = vmatprep.subr.bf16.mxu0 0
        %929 = vmatpush1.bf16.msra.mxu0 0
        %930 = vmatprep.subr.bf16.mxu0 0
        %931 = vmatpush1.bf16.msra.mxu0 0
        %932 = vmatprep.subr.bf16.mxu0 0
        %933 = vmatpush1.bf16.msra.mxu0 0
        %934 = vmatprep.subr.bf16.mxu0 0
        %935 = vmatpush1.bf16.msra.mxu0 0
        %936 = vmatprep.subr.bf16.mxu0 0
        %937 = vmatpush1.bf16.msra.mxu0 0
        %938 = vmatprep.subr.bf16.mxu0 0
        %939 = vmatpush1.bf16.msra.mxu0 0
        %940 = vmatprep.subr.bf16.mxu0 0
        %941 = vmatpush1.bf16.msra.mxu0 0
        %942 = vmatprep.subr.bf16.mxu0 0
        %943 = vmatpush1.bf16.msra.mxu0 0
        %944 = vmatprep.subr.bf16.mxu0 0
        %945 = vmatpush1.bf16.msra.mxu0 0
        %946 = vmatprep.subr.bf16.mxu0 0
        %947 = vmatpush1.bf16.msra.mxu0 0
        %948 = vmatprep.subr.bf16.mxu0 0
        %949 = vmatpush1.bf16.msra.mxu0 0
        %950 = vmatprep.subr.bf16.mxu0 0
        %951 = vmatpush1.bf16.msra.mxu0 0
        %952 = vmatprep.mubr.bf16.mxu0 0
        %953 = vmatmul.mubr.bf16.gmra.mrb[0].mxu0 %v401
        %v954 = vpop.f32.mrb[0].mxu0
        %v955 = vadd.f32 %v887, %v954
        %v956 = vpop.f32.mrb[0].mxu0
        %v957 = vpop.f32.mrb[0].mxu0
        %v958 = vadd.f32 %v890, %v957
        %v959 = vpop.f32.mrb[0].mxu0
        %960 = vmatprep.mubr.bf16.mxu0 0
        %961 = vmatmul.mubr.bf16.gmra.mrb[0].mxu0 %v404
        %v962 = vpop.f32.mrb[0].mxu0
        %v963 = vadd.f32 %v895, %v962
        %v964 = vpop.f32.mrb[0].mxu0
        %v965 = vpop.f32.mrb[0].mxu0
        %v966 = vadd.f32 %v898, %v965
        %v967 = vpop.f32.mrb[0].mxu0
        %968 = vmatprep.mubr.bf16.mxu0 0
        %969 = vmatmul.mubr.bf16.gmra.mrb[0].mxu0 %v407
        %v970 = vpop.f32.mrb[0].mxu0
        %v971 = vadd.f32 %v903, %v970
        %v972 = vpop.f32.mrb[0].mxu0
        %v973 = vpop.f32.mrb[0].mxu0
        %v974 = vadd.f32 %v906, %v973
        %v975 = vpop.f32.mrb[0].mxu0
        %976 = vmatprep.mubr.bf16.mxu0 0
        %977 = vmatmul.mubr.bf16.gmra.mrb[0].mxu0 %v410
        %v978 = vpop.f32.mrb[0].mxu0
        %v979 = vadd.f32 %v911, %v978
        %v980 = vpop.f32.mrb[0].mxu0
        %v981 = vpop.f32.mrb[0].mxu0
        %v982 = vadd.f32 %v914, %v981
        %v983 = vpop.f32.mrb[0].mxu0
        %984 = vdwg.mxu0
        %s985 = scalar_lea.vmem [#allocation5], 12
        %v986 = vld [vmem:[%s985] sm:$0x3]
        %v988 = vsel %vm412, %v986, 0
        %990 = vmatprep.subr.bf16.mxu0 0
        %991 = vmatpush1.bf16.msra.mxu0 %v988
        %992 = vmatprep.subr.bf16.mxu0 0
        %993 = vmatpush1.bf16.msra.mxu0 0
        %994 = vmatprep.subr.bf16.mxu0 0
        %995 = vmatpush1.bf16.msra.mxu0 0
        %996 = vmatprep.subr.bf16.mxu0 0
        %997 = vmatpush1.bf16.msra.mxu0 0
        %998 = vmatprep.subr.bf16.mxu0 0
        %999 = vmatpush1.bf16.msra.mxu0 0
        %1000 = vmatprep.subr.bf16.mxu0 0
        %1001 = vmatpush1.bf16.msra.mxu0 0
        %1002 = vmatprep.subr.bf16.mxu0 0
        %1003 = vmatpush1.bf16.msra.mxu0 0
        %1004 = vmatprep.subr.bf16.mxu0 0
        %1005 = vmatpush1.bf16.msra.mxu0 0
        %1006 = vmatprep.subr.bf16.mxu0 0
        %1007 = vmatpush1.bf16.msra.mxu0 0
        %1008 = vmatprep.subr.bf16.mxu0 0
        %1009 = vmatpush1.bf16.msra.mxu0 0
        %1010 = vmatprep.subr.bf16.mxu0 0
        %1011 = vmatpush1.bf16.msra.mxu0 0
        %1012 = vmatprep.subr.bf16.mxu0 0
        %1013 = vmatpush1.bf16.msra.mxu0 0
        %1014 = vmatprep.subr.bf16.mxu0 0
        %1015 = vmatpush1.bf16.msra.mxu0 0
        %1016 = vmatprep.subr.bf16.mxu0 0
        %1017 = vmatpush1.bf16.msra.mxu0 0
        %1018 = vmatprep.subr.bf16.mxu0 0
        %1019 = vmatpush1.bf16.msra.mxu0 0
        %1020 = vmatprep.subr.bf16.mxu0 0
        %1021 = vmatpush1.bf16.msra.mxu0 0
        %1022 = vmatprep.mubr.bf16.mxu0 0
        %1023 = vmatmul.mubr.bf16.gmra.mrb[0].mxu0 %v404
        %v1024 = vpop.f32.mrb[0].mxu0
        %v1025 = vadd.f32 0.0, %v1024
        %v1026 = vpop.f32.mrb[0].mxu0
        %v1027 = vpop.f32.mrb[0].mxu0
        %v1028 = vadd.f32 0.0, %v1027
        %v1029 = vpop.f32.mrb[0].mxu0
        %1030 = vmatprep.mubr.bf16.mxu0 0
        %1031 = vmatmul.mubr.bf16.gmra.mrb[0].mxu0 %v407
        %v1032 = vpop.f32.mrb[0].mxu0
        %v1033 = vadd.f32 0.0, %v1032
        %v1034 = vpop.f32.mrb[0].mxu0
        %v1035 = vpop.f32.mrb[0].mxu0
        %v1036 = vadd.f32 0.0, %v1035
        %v1037 = vpop.f32.mrb[0].mxu0
        %1038 = vmatprep.mubr.bf16.mxu0 0
        %1039 = vmatmul.mubr.bf16.gmra.mrb[0].mxu0 %v410
        %v1040 = vpop.f32.mrb[0].mxu0
        %v1041 = vadd.f32 0.0, %v1040
        %v1042 = vpop.f32.mrb[0].mxu0
        %v1043 = vpop.f32.mrb[0].mxu0
        %v1044 = vadd.f32 0.0, %v1043
        %v1045 = vpop.f32.mrb[0].mxu0
        %1046 = vmatprep.mubr.bf16.mxu0 0
        %1047 = vmatmul.mubr.bf16.gmra.mrb[0].mxu0 %v673
        %v1048 = vpop.f32.mrb[0].mxu0
        %v1049 = vadd.f32 0.0, %v1048
        %v1050 = vpop.f32.mrb[0].mxu0
        %v1051 = vpop.f32.mrb[0].mxu0
        %v1052 = vadd.f32 0.0, %v1051
        %v1053 = vpop.f32.mrb[0].mxu0
        %1054 = vdwg.mxu0
        %v1055 = vadd.f32 %v955, %v1025
        %v1056 = vadd.f32 %v958, %v1028
        %v1057 = vadd.f32 %v963, %v1033
        %v1058 = vadd.f32 %v966, %v1036
        %v1059 = vadd.f32 %v971, %v1041
        %v1060 = vadd.f32 %v974, %v1044
        %v1061 = vadd.f32 %v979, %v1049
        %v1062 = vadd.f32 %v982, %v1052
        %s1063 = scalar_lea.vmem [#allocation5], 14
        %v1064 = vld [vmem:[%s1063] sm:$0x3]
        %v1065 = vunpack.c.l.b16 %v817
        %v1066 = vunpack.c.l.b16 %v820
        %v1067 = vpack.c.b16 %v1066, %v1065
        %v1069 = vsel %vm399, %v1067, 0
        %v1072 = vsel %vm412, %v1064, 0
        %1074 = vmatprep.subr.bf16.mxu0 0
        %1075 = vmatpush1.bf16.msra.mxu0 %v1072
        %1076 = vmatprep.subr.bf16.mxu0 0
        %1077 = vmatpush1.bf16.msra.mxu0 0
        %1078 = vmatprep.subr.bf16.mxu0 0
        %1079 = vmatpush1.bf16.msra.mxu0 0
        %1080 = vmatprep.subr.bf16.mxu0 0
        %1081 = vmatpush1.bf16.msra.mxu0 0
        %1082 = vmatprep.subr.bf16.mxu0 0
        %1083 = vmatpush1.bf16.msra.mxu0 0
        %1084 = vmatprep.subr.bf16.mxu0 0
        %1085 = vmatpush1.bf16.msra.mxu0 0
        %1086 = vmatprep.subr.bf16.mxu0 0
        %1087 = vmatpush1.bf16.msra.mxu0 0
        %1088 = vmatprep.subr.bf16.mxu0 0
        %1089 = vmatpush1.bf16.msra.mxu0 0
        %1090 = vmatprep.subr.bf16.mxu0 0
        %1091 = vmatpush1.bf16.msra.mxu0 0
        %1092 = vmatprep.subr.bf16.mxu0 0
        %1093 = vmatpush1.bf16.msra.mxu0 0
        %1094 = vmatprep.subr.bf16.mxu0 0
        %1095 = vmatpush1.bf16.msra.mxu0 0
        %1096 = vmatprep.subr.bf16.mxu0 0
        %1097 = vmatpush1.bf16.msra.mxu0 0
        %1098 = vmatprep.subr.bf16.mxu0 0
        %1099 = vmatpush1.bf16.msra.mxu0 0
        %1100 = vmatprep.subr.bf16.mxu0 0
        %1101 = vmatpush1.bf16.msra.mxu0 0
        %1102 = vmatprep.subr.bf16.mxu0 0
        %1103 = vmatpush1.bf16.msra.mxu0 0
        %1104 = vmatprep.subr.bf16.mxu0 0
        %1105 = vmatpush1.bf16.msra.mxu0 0
        %1106 = vmatprep.mubr.bf16.mxu0 0
        %1107 = vmatmul.mubr.bf16.gmra.mrb[0].mxu0 %v841
        %v1108 = vpop.f32.mrb[0].mxu0
        %v1109 = vadd.f32 0.0, %v1108
        %v1110 = vpop.f32.mrb[0].mxu0
        %v1111 = vpop.f32.mrb[0].mxu0
        %v1112 = vadd.f32 0.0, %v1111
        %v1113 = vpop.f32.mrb[0].mxu0
        %1114 = vmatprep.mubr.bf16.mxu0 0
        %1115 = vmatmul.mubr.bf16.gmra.mrb[0].mxu0 %v844
        %v1116 = vpop.f32.mrb[0].mxu0
        %v1117 = vadd.f32 0.0, %v1116
        %v1118 = vpop.f32.mrb[0].mxu0
        %v1119 = vpop.f32.mrb[0].mxu0
        %v1120 = vadd.f32 0.0, %v1119
        %v1121 = vpop.f32.mrb[0].mxu0
        %1122 = vmatprep.mubr.bf16.mxu0 0
        %1123 = vmatmul.mubr.bf16.gmra.mrb[0].mxu0 %v847
        %v1124 = vpop.f32.mrb[0].mxu0
        %v1125 = vadd.f32 0.0, %v1124
        %v1126 = vpop.f32.mrb[0].mxu0
        %v1127 = vpop.f32.mrb[0].mxu0
        %v1128 = vadd.f32 0.0, %v1127
        %v1129 = vpop.f32.mrb[0].mxu0
        %1130 = vmatprep.mubr.bf16.mxu0 0
        %1131 = vmatmul.mubr.bf16.gmra.mrb[0].mxu0 %v1069
        %v1132 = vpop.f32.mrb[0].mxu0
        %v1133 = vadd.f32 0.0, %v1132
        %v1134 = vpop.f32.mrb[0].mxu0
        %v1135 = vpop.f32.mrb[0].mxu0
        %v1136 = vadd.f32 0.0, %v1135
        %v1137 = vpop.f32.mrb[0].mxu0
        %1138 = vdwg.mxu0
        %v1139 = vadd.f32 %v1055, %v1109
        %v1140 = vadd.f32 %v1056, %v1112
        %v1141 = vadd.f32 %v1057, %v1117
        %v1142 = vadd.f32 %v1058, %v1120
        %v1143 = vadd.f32 %v1059, %v1125
        %v1144 = vadd.f32 %v1060, %v1128
        %v1145 = vadd.f32 %v1061, %v1133
        %v1146 = vadd.f32 %v1062, %v1136
        %v1147 = vadd.f32 %v1139, %v755
        %v1148 = vadd.f32 %v1140, %v755
        %v1149 = vadd.f32 %v1141, %v755
        %v1150 = vadd.f32 %v1142, %v755
        %v1151 = vadd.f32 %v1143, %v755
        %v1152 = vadd.f32 %v1144, %v755
        %v1153 = vadd.f32 %v1145, %v755
        %v1154 = vadd.f32 %v1146, %v755
        %s1155 = scalar_lea.vmem %s229, 64 [#allocation8]
        %1156 = vst.msk [vmem:[%s1155] sm:$0xff] %vm399, %v1147
        %1157 = vst.msk [vmem:[%s1155 + $0x8] sm:$0xff] %vm399, %v1148
        %1158 = vst.msk [vmem:[%s1155 + $0x10] sm:$0xff] %vm399, %v1149
        %1159 = vst.msk [vmem:[%s1155 + $0x18] sm:$0xff] %vm399, %v1150
        %1160 = vst.msk [vmem:[%s1155 + $0x20] sm:$0xff] %vm399, %v1151
        %1161 = vst.msk [vmem:[%s1155 + $0x28] sm:$0xff] %vm399, %v1152
        %1162 = vst.msk [vmem:[%s1155 + $0x30] sm:$0xff] %vm399, %v1153
        %1163 = vst.msk [vmem:[%s1155 + $0x38] sm:$0xff] %vm399, %v1154
        %v1165 = vshrl.u32 %v246, 16
        %v1167 = vrot.slane %v1165, 4
        %v1168 = vshll.u32 %v246, 16
        %v1170 = vrot.slane %v1168, 5
        %v1171 = vor.u32 %v1167, %v1170
        %v1172 = vrot.slane %v1171, 4
        %v1174 = vshll.u32 %v247, 16
        %v1176 = vrot.slane %v1174, 5
        %v1177 = vsel %vm263, %v1172, %v1176
        %v1178 = vshrl.u32 %v247, 16
        %v1180 = vrot.slane %v1178, 4
        %v1181 = vor.u32 %v1180, %v1176
        %v1182 = vrot.slane %v1181, 4
        %v1184 = vshll.u32 %v253, 16
        %v1186 = vrot.slane %v1184, 5
        %v1187 = vsel %vm263, %v1182, %v1186
        %s1188 = scalar_lea.vmem [#allocation5], 16
        %v1189 = vld [vmem:[%s1188] sm:$0x3]
        %s1190 = scalar_lea.vmem [#allocation5], 18
        %v1191 = vld [vmem:[%s1190] sm:$0x3]
        %v1193 = vsel %vm412, %v1191, 0
        %1195 = vmatprep.subr.bf16.mxu0 0
        %1196 = vmatpush1.bf16.msra.mxu0 %v1193
        %1197 = vmatprep.subr.bf16.mxu0 0
        %1198 = vmatpush1.bf16.msra.mxu0 0
        %1199 = vmatprep.subr.bf16.mxu0 0
        %1200 = vmatpush1.bf16.msra.mxu0 0
        %1201 = vmatprep.subr.bf16.mxu0 0
        %1202 = vmatpush1.bf16.msra.mxu0 0
        %1203 = vmatprep.subr.bf16.mxu0 0
        %1204 = vmatpush1.bf16.msra.mxu0 0
        %1205 = vmatprep.subr.bf16.mxu0 0
        %1206 = vmatpush1.bf16.msra.mxu0 0
        %1207 = vmatprep.subr.bf16.mxu0 0
        %1208 = vmatpush1.bf16.msra.mxu0 0
        %1209 = vmatprep.subr.bf16.mxu0 0
        %1210 = vmatpush1.bf16.msra.mxu0 0
        %1211 = vmatprep.subr.bf16.mxu0 0
        %1212 = vmatpush1.bf16.msra.mxu0 0
        %1213 = vmatprep.subr.bf16.mxu0 0
        %1214 = vmatpush1.bf16.msra.mxu0 0
        %1215 = vmatprep.subr.bf16.mxu0 0
        %1216 = vmatpush1.bf16.msra.mxu0 0
        %1217 = vmatprep.subr.bf16.mxu0 0
        %1218 = vmatpush1.bf16.msra.mxu0 0
        %1219 = vmatprep.subr.bf16.mxu0 0
        %1220 = vmatpush1.bf16.msra.mxu0 0
        %1221 = vmatprep.subr.bf16.mxu0 0
        %1222 = vmatpush1.bf16.msra.mxu0 0
        %1223 = vmatprep.subr.bf16.mxu0 0
        %1224 = vmatpush1.bf16.msra.mxu0 0
        %1225 = vmatprep.subr.bf16.mxu0 0
        %1226 = vmatpush1.bf16.msra.mxu0 0
        %1227 = vmatprep.mubr.bf16.mxu0 0
        %1228 = vmatmul.mubr.bf16.gmra.mrb[0].mxu0 %v404
        %v1229 = vpop.f32.mrb[0].mxu0
        %v1230 = vadd.f32 0.0, %v1229
        %v1231 = vpop.f32.mrb[0].mxu0
        %v1232 = vpop.f32.mrb[0].mxu0
        %v1233 = vadd.f32 0.0, %v1232
        %v1234 = vpop.f32.mrb[0].mxu0
        %1235 = vmatprep.mubr.bf16.mxu0 0
        %1236 = vmatmul.mubr.bf16.gmra.mrb[0].mxu0 %v407
        %v1237 = vpop.f32.mrb[0].mxu0
        %v1238 = vadd.f32 0.0, %v1237
        %v1239 = vpop.f32.mrb[0].mxu0
        %v1240 = vpop.f32.mrb[0].mxu0
        %v1241 = vadd.f32 0.0, %v1240
        %v1242 = vpop.f32.mrb[0].mxu0
        %1243 = vmatprep.mubr.bf16.mxu0 0
        %1244 = vmatmul.mubr.bf16.gmra.mrb[0].mxu0 %v410
        %v1245 = vpop.f32.mrb[0].mxu0
        %v1246 = vadd.f32 0.0, %v1245
        %v1247 = vpop.f32.mrb[0].mxu0
        %v1248 = vpop.f32.mrb[0].mxu0
        %v1249 = vadd.f32 0.0, %v1248
        %v1250 = vpop.f32.mrb[0].mxu0
        %1251 = vmatprep.mubr.bf16.mxu0 0
        %1252 = vmatmul.mubr.bf16.gmra.mrb[0].mxu0 %v673
        %v1253 = vpop.f32.mrb[0].mxu0
        %v1254 = vadd.f32 0.0, %v1253
        %v1255 = vpop.f32.mrb[0].mxu0
        %v1256 = vpop.f32.mrb[0].mxu0
        %v1257 = vadd.f32 0.0, %v1256
        %v1258 = vpop.f32.mrb[0].mxu0
        %1259 = vdwg.mxu0
        %v1261 = vsel %vm412, %v1189, 0
        %1263 = vmatprep.subr.bf16.mxu0 0
        %1264 = vmatpush1.bf16.msra.mxu0 %v1261
        %1265 = vmatprep.subr.bf16.mxu0 0
        %1266 = vmatpush1.bf16.msra.mxu0 0
        %1267 = vmatprep.subr.bf16.mxu0 0
        %1268 = vmatpush1.bf16.msra.mxu0 0
        %1269 = vmatprep.subr.bf16.mxu0 0
        %1270 = vmatpush1.bf16.msra.mxu0 0
        %1271 = vmatprep.subr.bf16.mxu0 0
        %1272 = vmatpush1.bf16.msra.mxu0 0
        %1273 = vmatprep.subr.bf16.mxu0 0
        %1274 = vmatpush1.bf16.msra.mxu0 0
        %1275 = vmatprep.subr.bf16.mxu0 0
        %1276 = vmatpush1.bf16.msra.mxu0 0
        %1277 = vmatprep.subr.bf16.mxu0 0
        %1278 = vmatpush1.bf16.msra.mxu0 0
        %1279 = vmatprep.subr.bf16.mxu0 0
        %1280 = vmatpush1.bf16.msra.mxu0 0
        %1281 = vmatprep.subr.bf16.mxu0 0
        %1282 = vmatpush1.bf16.msra.mxu0 0
        %1283 = vmatprep.subr.bf16.mxu0 0
        %1284 = vmatpush1.bf16.msra.mxu0 0
        %1285 = vmatprep.subr.bf16.mxu0 0
        %1286 = vmatpush1.bf16.msra.mxu0 0
        %1287 = vmatprep.subr.bf16.mxu0 0
        %1288 = vmatpush1.bf16.msra.mxu0 0
        %1289 = vmatprep.subr.bf16.mxu0 0
        %1290 = vmatpush1.bf16.msra.mxu0 0
        %1291 = vmatprep.subr.bf16.mxu0 0
        %1292 = vmatpush1.bf16.msra.mxu0 0
        %1293 = vmatprep.subr.bf16.mxu0 0
        %1294 = vmatpush1.bf16.msra.mxu0 0
        %1295 = vmatprep.mubr.bf16.mxu0 0
        %1296 = vmatmul.mubr.bf16.gmra.mrb[0].mxu0 %v505
        %v1297 = vpop.f32.mrb[0].mxu0
        %v1298 = vadd.f32 %v1230, %v1297
        %v1299 = vpop.f32.mrb[0].mxu0
        %v1300 = vpop.f32.mrb[0].mxu0
        %v1301 = vadd.f32 %v1233, %v1300
        %v1302 = vpop.f32.mrb[0].mxu0
        %1303 = vmatprep.mubr.bf16.mxu0 0
        %1304 = vmatmul.mubr.bf16.gmra.mrb[0].mxu0 %v508
        %v1305 = vpop.f32.mrb[0].mxu0
        %v1306 = vadd.f32 %v1238, %v1305
        %v1307 = vpop.f32.mrb[0].mxu0
        %v1308 = vpop.f32.mrb[0].mxu0
        %v1309 = vadd.f32 %v1241, %v1308
        %v1310 = vpop.f32.mrb[0].mxu0
        %1311 = vmatprep.mubr.bf16.mxu0 0
        %1312 = vmatmul.mubr.bf16.gmra.mrb[0].mxu0 %v511
        %v1313 = vpop.f32.mrb[0].mxu0
        %v1314 = vadd.f32 %v1246, %v1313
        %v1315 = vpop.f32.mrb[0].mxu0
        %v1316 = vpop.f32.mrb[0].mxu0
        %v1317 = vadd.f32 %v1249, %v1316
        %v1318 = vpop.f32.mrb[0].mxu0
        %1319 = vmatprep.mubr.bf16.mxu0 0
        %1320 = vmatmul.mubr.bf16.gmra.mrb[0].mxu0 %v589
        %v1321 = vpop.f32.mrb[0].mxu0
        %v1322 = vadd.f32 %v1254, %v1321
        %v1323 = vpop.f32.mrb[0].mxu0
        %v1324 = vpop.f32.mrb[0].mxu0
        %v1325 = vadd.f32 %v1257, %v1324
        %v1326 = vpop.f32.mrb[0].mxu0
        %1327 = vdwg.mxu0
        %s1328 = scalar_lea.vmem [#allocation5], 20
        %v1329 = vld [vmem:[%s1328] sm:$0x3]
        %v1332 = vunpack.c.l.b16 %v246
        %v1333 = vunpack.c.l.b16 %v247
        %v1334 = vpack.c.b16 %v1333, %v1332
        %v1336 = vsel %vm399, %v1334, 0
        %v1339 = vsel %vm412, %v1329, 0
        %1341 = vmatprep.subr.bf16.mxu0 0
        %1342 = vmatpush1.bf16.msra.mxu0 %v1339
        %1343 = vmatprep.subr.bf16.mxu0 0
        %1344 = vmatpush1.bf16.msra.mxu0 0
        %1345 = vmatprep.subr.bf16.mxu0 0
        %1346 = vmatpush1.bf16.msra.mxu0 0
        %1347 = vmatprep.subr.bf16.mxu0 0
        %1348 = vmatpush1.bf16.msra.mxu0 0
        %1349 = vmatprep.subr.bf16.mxu0 0
        %1350 = vmatpush1.bf16.msra.mxu0 0
        %1351 = vmatprep.subr.bf16.mxu0 0
        %1352 = vmatpush1.bf16.msra.mxu0 0
        %1353 = vmatprep.subr.bf16.mxu0 0
        %1354 = vmatpush1.bf16.msra.mxu0 0
        %1355 = vmatprep.subr.bf16.mxu0 0
        %1356 = vmatpush1.bf16.msra.mxu0 0
        %1357 = vmatprep.subr.bf16.mxu0 0
        %1358 = vmatpush1.bf16.msra.mxu0 0
        %1359 = vmatprep.subr.bf16.mxu0 0
        %1360 = vmatpush1.bf16.msra.mxu0 0
        %1361 = vmatprep.subr.bf16.mxu0 0
        %1362 = vmatpush1.bf16.msra.mxu0 0
        %1363 = vmatprep.subr.bf16.mxu0 0
        %1364 = vmatpush1.bf16.msra.mxu0 0
        %1365 = vmatprep.subr.bf16.mxu0 0
        %1366 = vmatpush1.bf16.msra.mxu0 0
        %1367 = vmatprep.subr.bf16.mxu0 0
        %1368 = vmatpush1.bf16.msra.mxu0 0
        %1369 = vmatprep.subr.bf16.mxu0 0
        %1370 = vmatpush1.bf16.msra.mxu0 0
        %1371 = vmatprep.subr.bf16.mxu0 0
        %1372 = vmatpush1.bf16.msra.mxu0 0
        %1373 = vmatprep.mubr.bf16.mxu0 0
        %1374 = vmatmul.mubr.bf16.gmra.mrb[0].mxu0 %v508
        %v1375 = vpop.f32.mrb[0].mxu0
        %v1376 = vadd.f32 0.0, %v1375
        %v1377 = vpop.f32.mrb[0].mxu0
        %v1378 = vpop.f32.mrb[0].mxu0
        %v1379 = vadd.f32 0.0, %v1378
        %v1380 = vpop.f32.mrb[0].mxu0
        %1381 = vmatprep.mubr.bf16.mxu0 0
        %1382 = vmatmul.mubr.bf16.gmra.mrb[0].mxu0 %v511
        %v1383 = vpop.f32.mrb[0].mxu0
        %v1384 = vadd.f32 0.0, %v1383
        %v1385 = vpop.f32.mrb[0].mxu0
        %v1386 = vpop.f32.mrb[0].mxu0
        %v1387 = vadd.f32 0.0, %v1386
        %v1388 = vpop.f32.mrb[0].mxu0
        %1389 = vmatprep.mubr.bf16.mxu0 0
        %1390 = vmatmul.mubr.bf16.gmra.mrb[0].mxu0 %v589
        %v1391 = vpop.f32.mrb[0].mxu0
        %v1392 = vadd.f32 0.0, %v1391
        %v1393 = vpop.f32.mrb[0].mxu0
        %v1394 = vpop.f32.mrb[0].mxu0
        %v1395 = vadd.f32 0.0, %v1394
        %v1396 = vpop.f32.mrb[0].mxu0
        %1397 = vmatprep.mubr.bf16.mxu0 0
        %1398 = vmatmul.mubr.bf16.gmra.mrb[0].mxu0 %v1336
        %v1399 = vpop.f32.mrb[0].mxu0
        %v1400 = vadd.f32 0.0, %v1399
        %v1401 = vpop.f32.mrb[0].mxu0
        %v1402 = vpop.f32.mrb[0].mxu0
        %v1403 = vadd.f32 0.0, %v1402
        %v1404 = vpop.f32.mrb[0].mxu0
        %1405 = vdwg.mxu0
        %v1406 = vadd.f32 %v1298, %v1376
        %v1407 = vadd.f32 %v1301, %v1379
        %v1408 = vadd.f32 %v1306, %v1384
        %v1409 = vadd.f32 %v1309, %v1387
        %v1410 = vadd.f32 %v1314, %v1392
        %v1411 = vadd.f32 %v1317, %v1395
        %v1412 = vadd.f32 %v1322, %v1400
        %v1413 = vadd.f32 %v1325, %v1403
        %s1414 = scalar_lea.vmem [#allocation5], 22
        %v1415 = vld [vmem:[%s1414] sm:$0x3]
        %v1416 = vunpack.c.l.b16 %v1177
        %v1417 = vunpack.c.l.b16 %v1187
        %v1418 = vpack.c.b16 %v1417, %v1416
        %v1420 = vsel %vm399, %v1418, 0
        %v1423 = vsel %vm412, %v1415, 0
        %1425 = vmatprep.subr.bf16.mxu0 0
        %1426 = vmatpush1.bf16.msra.mxu0 %v1423
        %1427 = vmatprep.subr.bf16.mxu0 0
        %1428 = vmatpush1.bf16.msra.mxu0 0
        %1429 = vmatprep.subr.bf16.mxu0 0
        %1430 = vmatpush1.bf16.msra.mxu0 0
        %1431 = vmatprep.subr.bf16.mxu0 0
        %1432 = vmatpush1.bf16.msra.mxu0 0
        %1433 = vmatprep.subr.bf16.mxu0 0
        %1434 = vmatpush1.bf16.msra.mxu0 0
        %1435 = vmatprep.subr.bf16.mxu0 0
        %1436 = vmatpush1.bf16.msra.mxu0 0
        %1437 = vmatprep.subr.bf16.mxu0 0
        %1438 = vmatpush1.bf16.msra.mxu0 0
        %1439 = vmatprep.subr.bf16.mxu0 0
        %1440 = vmatpush1.bf16.msra.mxu0 0
        %1441 = vmatprep.subr.bf16.mxu0 0
        %1442 = vmatpush1.bf16.msra.mxu0 0
        %1443 = vmatprep.subr.bf16.mxu0 0
        %1444 = vmatpush1.bf16.msra.mxu0 0
        %1445 = vmatprep.subr.bf16.mxu0 0
        %1446 = vmatpush1.bf16.msra.mxu0 0
        %1447 = vmatprep.subr.bf16.mxu0 0
        %1448 = vmatpush1.bf16.msra.mxu0 0
        %1449 = vmatprep.subr.bf16.mxu0 0
        %1450 = vmatpush1.bf16.msra.mxu0 0
        %1451 = vmatprep.subr.bf16.mxu0 0
        %1452 = vmatpush1.bf16.msra.mxu0 0
        %1453 = vmatprep.subr.bf16.mxu0 0
        %1454 = vmatpush1.bf16.msra.mxu0 0
        %1455 = vmatprep.subr.bf16.mxu0 0
        %1456 = vmatpush1.bf16.msra.mxu0 0
        %1457 = vmatprep.mubr.bf16.mxu0 0
        %1458 = vmatmul.mubr.bf16.gmra.mrb[0].mxu0 %v407
        %v1459 = vpop.f32.mrb[0].mxu0
        %v1460 = vadd.f32 0.0, %v1459
        %v1461 = vpop.f32.mrb[0].mxu0
        %v1462 = vpop.f32.mrb[0].mxu0
        %v1463 = vadd.f32 0.0, %v1462
        %v1464 = vpop.f32.mrb[0].mxu0
        %1465 = vmatprep.mubr.bf16.mxu0 0
        %1466 = vmatmul.mubr.bf16.gmra.mrb[0].mxu0 %v410
        %v1467 = vpop.f32.mrb[0].mxu0
        %v1468 = vadd.f32 0.0, %v1467
        %v1469 = vpop.f32.mrb[0].mxu0
        %v1470 = vpop.f32.mrb[0].mxu0
        %v1471 = vadd.f32 0.0, %v1470
        %v1472 = vpop.f32.mrb[0].mxu0
        %1473 = vmatprep.mubr.bf16.mxu0 0
        %1474 = vmatmul.mubr.bf16.gmra.mrb[0].mxu0 %v673
        %v1475 = vpop.f32.mrb[0].mxu0
        %v1476 = vadd.f32 0.0, %v1475
        %v1477 = vpop.f32.mrb[0].mxu0
        %v1478 = vpop.f32.mrb[0].mxu0
        %v1479 = vadd.f32 0.0, %v1478
        %v1480 = vpop.f32.mrb[0].mxu0
        %1481 = vmatprep.mubr.bf16.mxu0 0
        %1482 = vmatmul.mubr.bf16.gmra.mrb[0].mxu0 %v1420
        %v1483 = vpop.f32.mrb[0].mxu0
        %v1484 = vadd.f32 0.0, %v1483
        %v1485 = vpop.f32.mrb[0].mxu0
        %v1486 = vpop.f32.mrb[0].mxu0
        %v1487 = vadd.f32 0.0, %v1486
        %v1488 = vpop.f32.mrb[0].mxu0
        %1489 = vdwg.mxu0
        %v1490 = vadd.f32 %v1406, %v1460
        %v1491 = vadd.f32 %v1407, %v1463
        %v1492 = vadd.f32 %v1408, %v1468
        %v1493 = vadd.f32 %v1409, %v1471
        %v1494 = vadd.f32 %v1410, %v1476
        %v1495 = vadd.f32 %v1411, %v1479
        %v1496 = vadd.f32 %v1412, %v1484
        %v1497 = vadd.f32 %v1413, %v1487
        %v1498 = vadd.f32 %v1490, %v755
        %v1499 = vadd.f32 %v1491, %v755
        %v1500 = vadd.f32 %v1492, %v755
        %v1501 = vadd.f32 %v1493, %v755
        %v1502 = vadd.f32 %v1494, %v755
        %v1503 = vadd.f32 %v1495, %v755
        %v1504 = vadd.f32 %v1496, %v755
        %v1505 = vadd.f32 %v1497, %v755
        %s1506 = scalar_lea.vmem %s229, 128 [#allocation8]
        %1507 = vst.msk [vmem:[%s1506] sm:$0xff] %vm399, %v1498
        %1508 = vst.msk [vmem:[%s1506 + $0x8] sm:$0xff] %vm399, %v1499
        %1509 = vst.msk [vmem:[%s1506 + $0x10] sm:$0xff] %vm399, %v1500
        %1510 = vst.msk [vmem:[%s1506 + $0x18] sm:$0xff] %vm399, %v1501
        %1511 = vst.msk [vmem:[%s1506 + $0x20] sm:$0xff] %vm399, %v1502
        %1512 = vst.msk [vmem:[%s1506 + $0x28] sm:$0xff] %vm399, %v1503
        %1513 = vst.msk [vmem:[%s1506 + $0x30] sm:$0xff] %vm399, %v1504
        %1514 = vst.msk [vmem:[%s1506 + $0x38] sm:$0xff] %vm399, %v1505
        %v1517 = vrot.slane %v259, 5
        %v1518 = vrot.slane %v1517, 4
        %v1519 = vrot.slane %v247, 5
        %v1520 = vsel %vm783, %v1518, %v1519
        %v1521 = vrot.slane %v1519, 4
        %v1522 = vrot.slane %v253, 5
        %v1523 = vsel %vm783, %v1521, %v1522
        %s1524 = scalar_lea.vmem [#allocation5], 24
        %v1525 = vld [vmem:[%s1524] sm:$0x3]
        %s1526 = scalar_lea.vmem [#allocation5], 26
        %v1527 = vld [vmem:[%s1526] sm:$0x3]
        %v1529 = vsel %vm412, %v1527, 0
        %1531 = vmatprep.subr.bf16.mxu0 0
        %1532 = vmatpush1.bf16.msra.mxu0 %v1529
        %1533 = vmatprep.subr.bf16.mxu0 0
        %1534 = vmatpush1.bf16.msra.mxu0 0
        %1535 = vmatprep.subr.bf16.mxu0 0
        %1536 = vmatpush1.bf16.msra.mxu0 0
        %1537 = vmatprep.subr.bf16.mxu0 0
        %1538 = vmatpush1.bf16.msra.mxu0 0
        %1539 = vmatprep.subr.bf16.mxu0 0
        %1540 = vmatpush1.bf16.msra.mxu0 0
        %1541 = vmatprep.subr.bf16.mxu0 0
        %1542 = vmatpush1.bf16.msra.mxu0 0
        %1543 = vmatprep.subr.bf16.mxu0 0
        %1544 = vmatpush1.bf16.msra.mxu0 0
        %1545 = vmatprep.subr.bf16.mxu0 0
        %1546 = vmatpush1.bf16.msra.mxu0 0
        %1547 = vmatprep.subr.bf16.mxu0 0
        %1548 = vmatpush1.bf16.msra.mxu0 0
        %1549 = vmatprep.subr.bf16.mxu0 0
        %1550 = vmatpush1.bf16.msra.mxu0 0
        %1551 = vmatprep.subr.bf16.mxu0 0
        %1552 = vmatpush1.bf16.msra.mxu0 0
        %1553 = vmatprep.subr.bf16.mxu0 0
        %1554 = vmatpush1.bf16.msra.mxu0 0
        %1555 = vmatprep.subr.bf16.mxu0 0
        %1556 = vmatpush1.bf16.msra.mxu0 0
        %1557 = vmatprep.subr.bf16.mxu0 0
        %1558 = vmatpush1.bf16.msra.mxu0 0
        %1559 = vmatprep.subr.bf16.mxu0 0
        %1560 = vmatpush1.bf16.msra.mxu0 0
        %1561 = vmatprep.subr.bf16.mxu0 0
        %1562 = vmatpush1.bf16.msra.mxu0 0
        %1563 = vmatprep.mubr.bf16.mxu0 0
        %1564 = vmatmul.mubr.bf16.gmra.mrb[0].mxu0 %v841
        %v1565 = vpop.f32.mrb[0].mxu0
        %v1566 = vadd.f32 0.0, %v1565
        %v1567 = vpop.f32.mrb[0].mxu0
        %v1568 = vpop.f32.mrb[0].mxu0
        %v1569 = vadd.f32 0.0, %v1568
        %v1570 = vpop.f32.mrb[0].mxu0
        %1571 = vmatprep.mubr.bf16.mxu0 0
        %1572 = vmatmul.mubr.bf16.gmra.mrb[0].mxu0 %v844
        %v1573 = vpop.f32.mrb[0].mxu0
        %v1574 = vadd.f32 0.0, %v1573
        %v1575 = vpop.f32.mrb[0].mxu0
        %v1576 = vpop.f32.mrb[0].mxu0
        %v1577 = vadd.f32 0.0, %v1576
        %v1578 = vpop.f32.mrb[0].mxu0
        %1579 = vmatprep.mubr.bf16.mxu0 0
        %1580 = vmatmul.mubr.bf16.gmra.mrb[0].mxu0 %v847
        %v1581 = vpop.f32.mrb[0].mxu0
        %v1582 = vadd.f32 0.0, %v1581
        %v1583 = vpop.f32.mrb[0].mxu0
        %v1584 = vpop.f32.mrb[0].mxu0
        %v1585 = vadd.f32 0.0, %v1584
        %v1586 = vpop.f32.mrb[0].mxu0
        %1587 = vmatprep.mubr.bf16.mxu0 0
        %1588 = vmatmul.mubr.bf16.gmra.mrb[0].mxu0 %v1069
        %v1589 = vpop.f32.mrb[0].mxu0
        %v1590 = vadd.f32 0.0, %v1589
        %v1591 = vpop.f32.mrb[0].mxu0
        %v1592 = vpop.f32.mrb[0].mxu0
        %v1593 = vadd.f32 0.0, %v1592
        %v1594 = vpop.f32.mrb[0].mxu0
        %1595 = vdwg.mxu0
        %v1597 = vsel %vm412, %v1525, 0
        %1599 = vmatprep.subr.bf16.mxu0 0
        %1600 = vmatpush1.bf16.msra.mxu0 %v1597
        %1601 = vmatprep.subr.bf16.mxu0 0
        %1602 = vmatpush1.bf16.msra.mxu0 0
        %1603 = vmatprep.subr.bf16.mxu0 0
        %1604 = vmatpush1.bf16.msra.mxu0 0
        %1605 = vmatprep.subr.bf16.mxu0 0
        %1606 = vmatpush1.bf16.msra.mxu0 0
        %1607 = vmatprep.subr.bf16.mxu0 0
        %1608 = vmatpush1.bf16.msra.mxu0 0
        %1609 = vmatprep.subr.bf16.mxu0 0
        %1610 = vmatpush1.bf16.msra.mxu0 0
        %1611 = vmatprep.subr.bf16.mxu0 0
        %1612 = vmatpush1.bf16.msra.mxu0 0
        %1613 = vmatprep.subr.bf16.mxu0 0
        %1614 = vmatpush1.bf16.msra.mxu0 0
        %1615 = vmatprep.subr.bf16.mxu0 0
        %1616 = vmatpush1.bf16.msra.mxu0 0
        %1617 = vmatprep.subr.bf16.mxu0 0
        %1618 = vmatpush1.bf16.msra.mxu0 0
        %1619 = vmatprep.subr.bf16.mxu0 0
        %1620 = vmatpush1.bf16.msra.mxu0 0
        %1621 = vmatprep.subr.bf16.mxu0 0
        %1622 = vmatpush1.bf16.msra.mxu0 0
        %1623 = vmatprep.subr.bf16.mxu0 0
        %1624 = vmatpush1.bf16.msra.mxu0 0
        %1625 = vmatprep.subr.bf16.mxu0 0
        %1626 = vmatpush1.bf16.msra.mxu0 0
        %1627 = vmatprep.subr.bf16.mxu0 0
        %1628 = vmatpush1.bf16.msra.mxu0 0
        %1629 = vmatprep.subr.bf16.mxu0 0
        %1630 = vmatpush1.bf16.msra.mxu0 0
        %1631 = vmatprep.mubr.bf16.mxu0 0
        %1632 = vmatmul.mubr.bf16.gmra.mrb[0].mxu0 %v404
        %v1633 = vpop.f32.mrb[0].mxu0
        %v1634 = vadd.f32 %v1566, %v1633
        %v1635 = vpop.f32.mrb[0].mxu0
        %v1636 = vpop.f32.mrb[0].mxu0
        %v1637 = vadd.f32 %v1569, %v1636
        %v1638 = vpop.f32.mrb[0].mxu0
        %1639 = vmatprep.mubr.bf16.mxu0 0
        %1640 = vmatmul.mubr.bf16.gmra.mrb[0].mxu0 %v407
        %v1641 = vpop.f32.mrb[0].mxu0
        %v1642 = vadd.f32 %v1574, %v1641
        %v1643 = vpop.f32.mrb[0].mxu0
        %v1644 = vpop.f32.mrb[0].mxu0
        %v1645 = vadd.f32 %v1577, %v1644
        %v1646 = vpop.f32.mrb[0].mxu0
        %1647 = vmatprep.mubr.bf16.mxu0 0
        %1648 = vmatmul.mubr.bf16.gmra.mrb[0].mxu0 %v410
        %v1649 = vpop.f32.mrb[0].mxu0
        %v1650 = vadd.f32 %v1582, %v1649
        %v1651 = vpop.f32.mrb[0].mxu0
        %v1652 = vpop.f32.mrb[0].mxu0
        %v1653 = vadd.f32 %v1585, %v1652
        %v1654 = vpop.f32.mrb[0].mxu0
        %1655 = vmatprep.mubr.bf16.mxu0 0
        %1656 = vmatmul.mubr.bf16.gmra.mrb[0].mxu0 %v673
        %v1657 = vpop.f32.mrb[0].mxu0
        %v1658 = vadd.f32 %v1590, %v1657
        %v1659 = vpop.f32.mrb[0].mxu0
        %v1660 = vpop.f32.mrb[0].mxu0
        %v1661 = vadd.f32 %v1593, %v1660
        %v1662 = vpop.f32.mrb[0].mxu0
        %1663 = vdwg.mxu0
        %s1664 = scalar_lea.vmem [#allocation5], 28
        %v1665 = vld [vmem:[%s1664] sm:$0x3]
        %v1667 = vsel %vm412, %v1665, 0
        %1669 = vmatprep.subr.bf16.mxu0 0
        %1670 = vmatpush1.bf16.msra.mxu0 %v1667
        %1671 = vmatprep.subr.bf16.mxu0 0
        %1672 = vmatpush1.bf16.msra.mxu0 0
        %1673 = vmatprep.subr.bf16.mxu0 0
        %1674 = vmatpush1.bf16.msra.mxu0 0
        %1675 = vmatprep.subr.bf16.mxu0 0
        %1676 = vmatpush1.bf16.msra.mxu0 0
        %1677 = vmatprep.subr.bf16.mxu0 0
        %1678 = vmatpush1.bf16.msra.mxu0 0
        %1679 = vmatprep.subr.bf16.mxu0 0
        %1680 = vmatpush1.bf16.msra.mxu0 0
        %1681 = vmatprep.subr.bf16.mxu0 0
        %1682 = vmatpush1.bf16.msra.mxu0 0
        %1683 = vmatprep.subr.bf16.mxu0 0
        %1684 = vmatpush1.bf16.msra.mxu0 0
        %1685 = vmatprep.subr.bf16.mxu0 0
        %1686 = vmatpush1.bf16.msra.mxu0 0
        %1687 = vmatprep.subr.bf16.mxu0 0
        %1688 = vmatpush1.bf16.msra.mxu0 0
        %1689 = vmatprep.subr.bf16.mxu0 0
        %1690 = vmatpush1.bf16.msra.mxu0 0
        %1691 = vmatprep.subr.bf16.mxu0 0
        %1692 = vmatpush1.bf16.msra.mxu0 0
        %1693 = vmatprep.subr.bf16.mxu0 0
        %1694 = vmatpush1.bf16.msra.mxu0 0
        %1695 = vmatprep.subr.bf16.mxu0 0
        %1696 = vmatpush1.bf16.msra.mxu0 0
        %1697 = vmatprep.subr.bf16.mxu0 0
        %1698 = vmatpush1.bf16.msra.mxu0 0
        %1699 = vmatprep.subr.bf16.mxu0 0
        %1700 = vmatpush1.bf16.msra.mxu0 0
        %1701 = vmatprep.mubr.bf16.mxu0 0
        %1702 = vmatmul.mubr.bf16.gmra.mrb[0].mxu0 %v407
        %v1703 = vpop.f32.mrb[0].mxu0
        %v1704 = vadd.f32 0.0, %v1703
        %v1705 = vpop.f32.mrb[0].mxu0
        %v1706 = vpop.f32.mrb[0].mxu0
        %v1707 = vadd.f32 0.0, %v1706
        %v1708 = vpop.f32.mrb[0].mxu0
        %1709 = vmatprep.mubr.bf16.mxu0 0
        %1710 = vmatmul.mubr.bf16.gmra.mrb[0].mxu0 %v410
        %v1711 = vpop.f32.mrb[0].mxu0
        %v1712 = vadd.f32 0.0, %v1711
        %v1713 = vpop.f32.mrb[0].mxu0
        %v1714 = vpop.f32.mrb[0].mxu0
        %v1715 = vadd.f32 0.0, %v1714
        %v1716 = vpop.f32.mrb[0].mxu0
        %1717 = vmatprep.mubr.bf16.mxu0 0
        %1718 = vmatmul.mubr.bf16.gmra.mrb[0].mxu0 %v673
        %v1719 = vpop.f32.mrb[0].mxu0
        %v1720 = vadd.f32 0.0, %v1719
        %v1721 = vpop.f32.mrb[0].mxu0
        %v1722 = vpop.f32.mrb[0].mxu0
        %v1723 = vadd.f32 0.0, %v1722
        %v1724 = vpop.f32.mrb[0].mxu0
        %1725 = vmatprep.mubr.bf16.mxu0 0
        %1726 = vmatmul.mubr.bf16.gmra.mrb[0].mxu0 %v1420
        %v1727 = vpop.f32.mrb[0].mxu0
        %v1728 = vadd.f32 0.0, %v1727
        %v1729 = vpop.f32.mrb[0].mxu0
        %v1730 = vpop.f32.mrb[0].mxu0
        %v1731 = vadd.f32 0.0, %v1730
        %v1732 = vpop.f32.mrb[0].mxu0
        %1733 = vdwg.mxu0
        %v1734 = vadd.f32 %v1634, %v1704
        %v1735 = vadd.f32 %v1637, %v1707
        %v1736 = vadd.f32 %v1642, %v1712
        %v1737 = vadd.f32 %v1645, %v1715
        %v1738 = vadd.f32 %v1650, %v1720
        %v1739 = vadd.f32 %v1653, %v1723
        %v1740 = vadd.f32 %v1658, %v1728
        %v1741 = vadd.f32 %v1661, %v1731
        %s1742 = scalar_lea.vmem [#allocation5], 30
        %v1743 = vld [vmem:[%s1742] sm:$0x3]
        %v1744 = vunpack.c.l.b16 %v1520
        %v1745 = vunpack.c.l.b16 %v1523
        %v1746 = vpack.c.b16 %v1745, %v1744
        %v1748 = vsel %vm399, %v1746, 0
        %v1751 = vsel %vm412, %v1743, 0
        %1753 = vmatprep.subr.bf16.mxu0 0
        %1754 = vmatpush1.bf16.msra.mxu0 %v1751
        %1755 = vmatprep.subr.bf16.mxu0 0
        %1756 = vmatpush1.bf16.msra.mxu0 0
        %1757 = vmatprep.subr.bf16.mxu0 0
        %1758 = vmatpush1.bf16.msra.mxu0 0
        %1759 = vmatprep.subr.bf16.mxu0 0
        %1760 = vmatpush1.bf16.msra.mxu0 0
        %1761 = vmatprep.subr.bf16.mxu0 0
        %1762 = vmatpush1.bf16.msra.mxu0 0
        %1763 = vmatprep.subr.bf16.mxu0 0
        %1764 = vmatpush1.bf16.msra.mxu0 0
        %1765 = vmatprep.subr.bf16.mxu0 0
        %1766 = vmatpush1.bf16.msra.mxu0 0
        %1767 = vmatprep.subr.bf16.mxu0 0
        %1768 = vmatpush1.bf16.msra.mxu0 0
        %1769 = vmatprep.subr.bf16.mxu0 0
        %1770 = vmatpush1.bf16.msra.mxu0 0
        %1771 = vmatprep.subr.bf16.mxu0 0
        %1772 = vmatpush1.bf16.msra.mxu0 0
        %1773 = vmatprep.subr.bf16.mxu0 0
        %1774 = vmatpush1.bf16.msra.mxu0 0
        %1775 = vmatprep.subr.bf16.mxu0 0
        %1776 = vmatpush1.bf16.msra.mxu0 0
        %1777 = vmatprep.subr.bf16.mxu0 0
        %1778 = vmatpush1.bf16.msra.mxu0 0
        %1779 = vmatprep.subr.bf16.mxu0 0
        %1780 = vmatpush1.bf16.msra.mxu0 0
        %1781 = vmatprep.subr.bf16.mxu0 0
        %1782 = vmatpush1.bf16.msra.mxu0 0
        %1783 = vmatprep.subr.bf16.mxu0 0
        %1784 = vmatpush1.bf16.msra.mxu0 0
        %1785 = vmatprep.mubr.bf16.mxu0 0
        %1786 = vmatmul.mubr.bf16.gmra.mrb[0].mxu0 %v844
        %v1787 = vpop.f32.mrb[0].mxu0
        %v1788 = vadd.f32 0.0, %v1787
        %v1789 = vpop.f32.mrb[0].mxu0
        %v1790 = vpop.f32.mrb[0].mxu0
        %v1791 = vadd.f32 0.0, %v1790
        %v1792 = vpop.f32.mrb[0].mxu0
        %1793 = vmatprep.mubr.bf16.mxu0 0
        %1794 = vmatmul.mubr.bf16.gmra.mrb[0].mxu0 %v847
        %v1795 = vpop.f32.mrb[0].mxu0
        %v1796 = vadd.f32 0.0, %v1795
        %v1797 = vpop.f32.mrb[0].mxu0
        %v1798 = vpop.f32.mrb[0].mxu0
        %v1799 = vadd.f32 0.0, %v1798
        %v1800 = vpop.f32.mrb[0].mxu0
        %1801 = vmatprep.mubr.bf16.mxu0 0
        %1802 = vmatmul.mubr.bf16.gmra.mrb[0].mxu0 %v1069
        %v1803 = vpop.f32.mrb[0].mxu0
        %v1804 = vadd.f32 0.0, %v1803
        %v1805 = vpop.f32.mrb[0].mxu0
        %v1806 = vpop.f32.mrb[0].mxu0
        %v1807 = vadd.f32 0.0, %v1806
        %v1808 = vpop.f32.mrb[0].mxu0
        %1809 = vmatprep.mubr.bf16.mxu0 0
        %1810 = vmatmul.mubr.bf16.gmra.mrb[0].mxu0 %v1748
        %v1811 = vpop.f32.mrb[0].mxu0
        %v1812 = vadd.f32 0.0, %v1811
        %v1813 = vpop.f32.mrb[0].mxu0
        %v1814 = vpop.f32.mrb[0].mxu0
        %v1815 = vadd.f32 0.0, %v1814
        %v1816 = vpop.f32.mrb[0].mxu0
        %1817 = vdwg.mxu0
        %v1818 = vadd.f32 %v1734, %v1788
        %v1819 = vadd.f32 %v1735, %v1791
        %v1820 = vadd.f32 %v1736, %v1796
        %v1821 = vadd.f32 %v1737, %v1799
        %v1822 = vadd.f32 %v1738, %v1804
        %v1823 = vadd.f32 %v1739, %v1807
        %v1824 = vadd.f32 %v1740, %v1812
        %v1825 = vadd.f32 %v1741, %v1815
        %v1826 = vadd.f32 %v1818, %v755
        %v1827 = vadd.f32 %v1819, %v755
        %v1828 = vadd.f32 %v1820, %v755
        %v1829 = vadd.f32 %v1821, %v755
        %v1830 = vadd.f32 %v1822, %v755
        %v1831 = vadd.f32 %v1823, %v755
        %v1832 = vadd.f32 %v1824, %v755
        %v1833 = vadd.f32 %v1825, %v755
        %s1834 = scalar_lea.vmem %s229, 192 [#allocation8]
        %1835 = vst.msk [vmem:[%s1834] sm:$0xff] %vm399, %v1826
        %1836 = vst.msk [vmem:[%s1834 + $0x8] sm:$0xff] %vm399, %v1827
        %1837 = vst.msk [vmem:[%s1834 + $0x10] sm:$0xff] %vm399, %v1828
        %1838 = vst.msk [vmem:[%s1834 + $0x18] sm:$0xff] %vm399, %v1829
        %1839 = vst.msk [vmem:[%s1834 + $0x20] sm:$0xff] %vm399, %v1830
        %1840 = vst.msk [vmem:[%s1834 + $0x28] sm:$0xff] %vm399, %v1831
        %1841 = vst.msk [vmem:[%s1834 + $0x30] sm:$0xff] %vm399, %v1832
        %1842 = vst.msk [vmem:[%s1834 + $0x38] sm:$0xff] %vm399, %v1833
        %s1843 = sand.u32 %s111, 1
        %s1844 = scalar_lea.sflag [#allocation4], %s1843
        %s1845 = sand.u32 %s111, 1
        %s1846 = smul.addr %s1845, 256
        %s1847 = scalar_lea.vmem [#allocation8], %s1846
        // Predicated region
        $region45: #{upsample_forward.1} parent=31 // pred_check
          %p1848 = pneg %p121
        $region46: #{upsample_forward.1} parent=31 // pred_check_branch
          %1850 = sbr.rel (%p1848) target = $region48
        $region47: #{upsample_forward.1} parent=31 // pred_region
          #allocation10 [shape = 'u32[6]{0}', space=smem, size = 0x18, scoped, tag = 'DMA stride descriptor']
          %s1851 = smul.u32 4, %s26
          %s1853 = ssub.s32 4096, 4096
          %1854 = vsyncadd %s1844, %s1853
          %s1855 = smul.addr %s1851, 2
          %s1856 = smul.addr %s25, 128
          %s1857 = sadd.s32 %s1855, %s1856
          %s1858 = smul.addr %s1857, 128
          %s1859 = scalar_lea.hbm %s3, %s1858
          %s1861 = sshll.u32 1, 14
          %s1862 = sxor.u32 4294967295, %s1861
          %s1865 = sshll.u32 7, 18
          %s1866 = sxor.u32 4294967295, %s1865
          %s1867 = sand.u32 0, %s1866
          %s1869 = sor.u32 %s1867, 0
          %s1871 = sshll.u32 3, 24
          %s1872 = sxor.u32 4294967295, %s1871
          %s1873 = sand.u32 %s1869, %s1872
          %s1875 = sor.u32 %s1873, 0
          %s1876 = sshll.u32 %s1847, 4
          %s1877 = int_to_ptr.vmem [resolvable:$true] %s1876
          %1883 = sst [smem:[#allocation10]] 1024
          %s1884 = scalar_lea.smem [#allocation10], 1
          %1885 = sst [smem:[%s1884]] 4096
          %s1886 = scalar_lea.smem [#allocation10], 2
          %1887 = sst [smem:[%s1886]] 8
          %s1888 = scalar_lea.smem [#allocation10], 3
          %1889 = sst [smem:[%s1888]] 128
          %s1890 = scalar_lea.smem [#allocation10], 4
          %1891 = sst [smem:[%s1890]] 128
          %s1892 = scalar_lea.smem [#allocation10], 5
          %1893 = sst [smem:[%s1892]] 8
          %1895 = dma.general %s1877, 4096, %s1859, %s1844, [#allocation9], [#allocation10], %s1875, 0
        $region48: #{upsample_forward.1} parent=31 // pred_fallthru
          _
      $region32: #{upsample_forward.1} parent=5 // pred_fallthru
        _
      %p1896 = scmp.le.s32.totalorder 2, %s16
      // Predicated region
      $region49: #{upsample_forward.1} parent=5 // pred_check
        %p1897 = pneg %p1896
      $region50: #{upsample_forward.1} parent=5 // pred_check_branch
        %1899 = sbr.rel (%p1897) target = $region52
      $region51: #{upsample_forward.1} parent=5 // pred_region
        %s1900 = ssub.s32 %s16, 2
        // Predicated region
        $region53: #{upsample_forward.1} parent=51 // pred_check
          %p1901 = pneg %p127
        $region54: #{upsample_forward.1} parent=51 // pred_check_branch
          %1903 = sbr.rel (%p1901) target = $region56
        $region55: #{upsample_forward.1} parent=51 // pred_region
          %s1904 = sand.u32 %s112, 1
          %s1905 = scalar_lea.sflag [#allocation4], %s1904
          %s1906 = sand.u32 %s112, 1
          %s1907 = smul.addr %s1906, 256
          %s1908 = scalar_lea.vmem [#allocation8], %s1907
          %1909 = dma.done %s1905, 4096
        $region56: #{upsample_forward.1} parent=51 // pred_fallthru
          _
      $region52: #{upsample_forward.1} parent=5 // pred_fallthru
        _
    $region6: #{upsample_forward.1} parent=1 // loop_footer
      %s20 = sadd.s32 1, %s16
    $region7: #{upsample_forward.1} parent=1 // loop_footer_branch
      %15 = sbr.rel target = $region3
    $region8: #{upsample_forward.1} parent=1 // loop_exit
      _
    %1910 = vsyncpa [#allocation3], 1
    %s1911 = scalar_lea.sflag [#allocation3], 1
    %1912 = vsyncpa %s1911, 1
    %1913 = vsyncpa [#allocation6], 1
    %1914 = vsyncpa [#allocation4], 1
    %s1915 = scalar_lea.sflag [#allocation4], 1
    %1916 = vsyncpa %s1915, 1

</llo_original>
